<compile_context>
chip_gen: v7x
topology: tpu7x:2x2x1
jax: 0.10.0
libtpu: 0.0.40
codegen_flags: <defaults>
</compile_context>

<pallas_src>
import math

import jax
import jax.numpy as jnp
from jax import lax
from jax.experimental import pallas as pl
from jax.experimental.pallas import tpu as pltpu

ENCODER_DIM = 32
NUM_HEADS = 4
D_K = ENCODER_DIM // NUM_HEADS
SEQ = 8
BATCH = 2
NEG_INF = -1e30  # finite additive-mask sentinel (no NaN propagation)


def mhsa_kernel(q_in_ref, k_in_ref, v_in_ref, mask_ref,
                wq_ref, bq_ref, wk_ref, bk_ref, wv_ref, bv_ref,
                wo_ref, bo_ref, out_ref):
    D = ENCODER_DIM
    T = q_in_ref.shape[1]

    xq = q_in_ref[0]          # (T, D)
    xk = k_in_ref[0]
    xv = v_in_ref[0]

    # Q/K/V projections for this batch element (three small MXU dots).
    q = jnp.dot(xq, wq_ref[...], preferred_element_type=jnp.float32) + bq_ref[...]
    k = jnp.dot(xk, wk_ref[...], preferred_element_type=jnp.float32) + bk_ref[...]
    v = jnp.dot(xv, wv_ref[...], preferred_element_type=jnp.float32) + bv_ref[...]

    add_mask = mask_ref[0]    # (T, T) f32 additive mask: 0 (attend) / -1e30 (masked)
    scale = 1.0 / math.sqrt(D_K)

    # Register accumulator for the output projection (W_o folded per head):
    #   out = sum_h (softmax(q_h k_h^T / sqrt(d_k)) @ v_h) @ W_o[h*d_k:(h+1)*d_k, :] + b_o
    out_acc = jnp.zeros((T, D), jnp.float32)

    for h in range(NUM_HEADS):               # static unroll over heads
        lo = h * D_K
        hi = lo + D_K
        qh = q[:, lo:hi]                     # (T, d_k)
        kh = k[:, lo:hi]
        vh = v[:, lo:hi]

        # contract last dims directly (no explicit kh.T / XLU transpose)
        scores = lax.dot_general(qh, kh, (((1,), (1,)), ((), ())),
                                 preferred_element_type=jnp.float32) * scale
        scores = scores + add_mask           # additive mask: single VPU add
        m = jnp.max(scores, axis=-1, keepdims=True)
        p = jnp.exp(scores - m)              # masked entries underflow to exactly 0
        denom = jnp.sum(p, axis=-1, keepdims=True)
        attn = p / denom                     # exact reciprocal (tight tolerance)
        # TODO(synk): dropout on attn omitted (module evaluated in eval mode -> identity).

        ov = jnp.dot(attn, vh, preferred_element_type=jnp.float32)        # (T, d_k)
        out_acc = out_acc + jnp.dot(ov, wo_ref[lo:hi, :],
                                    preferred_element_type=jnp.float32)   # (T, D)

    out = out_acc + bo_ref[...]
    # TODO(synk): dropout on the output omitted (eval mode -> identity).

    # Single merged lane-contiguous store: [out | K | V] -> one output DMA.
    out_ref[0] = jnp.concatenate([out, k, v], axis=-1).astype(out_ref.dtype)


def mhsa_forward(query, key, value, mask, params):
    wq, bq, wk, bk, wv, bv, wo, bo = params
    B, T, D = query.shape
    H, dk = NUM_HEADS, D_K

    # Additive f32 mask built once in the wrapper (cheap, O(B*T*T)).
    add_mask = jnp.where(mask == 0, jnp.float32(NEG_INF), jnp.float32(0.0))

    weight_spec = pl.BlockSpec((D, D), lambda b: (0, 0))
    bias_spec = pl.BlockSpec((1, D), lambda b: (0, 0))

    packed = pl.pallas_call(
        mhsa_kernel,
        out_shape=jax.ShapeDtypeStruct((B, T, 3 * D), jnp.float32),
        grid=(B,),
        in_specs=[
            pl.BlockSpec((1, T, D), lambda b: (b, 0, 0)),   # query
            pl.BlockSpec((1, T, D), lambda b: (b, 0, 0)),   # key
            pl.BlockSpec((1, T, D), lambda b: (b, 0, 0)),   # value
            pl.BlockSpec((1, T, T), lambda b: (b, 0, 0)),   # additive mask
            weight_spec, bias_spec,                          # wq, bq
            weight_spec, bias_spec,                          # wk, bk
            weight_spec, bias_spec,                          # wv, bv
            weight_spec, bias_spec,                          # wo, bo
        ],
        out_specs=pl.BlockSpec((1, T, 3 * D), lambda b: (b, 0, 0)),
        compiler_params=pltpu.CompilerParams(
            dimension_semantics=("parallel",)),
    )(query, key, value, add_mask, wq, bq, wk, bk, wv, bv, wo, bo)

    out = packed[:, :, :D]
    k_flat = packed[:, :, D:2 * D]
    v_flat = packed[:, :, 2 * D:]

    # Rebuild the (B, H, T, 2*d_k) cache layout in the wrapper (cheap XLA ops).
    k_heads = k_flat.reshape(B, T, H, dk).transpose(0, 2, 1, 3)
    v_heads = v_flat.reshape(B, T, H, dk).transpose(0, 2, 1, 3)
    new_cache = jnp.concatenate([k_heads, v_heads], axis=-1)
    # TODO(synk): incoming non-empty cache concatenation path not implemented
    # (module is exercised with the default empty cache).
    return out, new_cache


def mhsa_reference(query, key, value, mask, params):
    """Pure-JAX reference mirroring the PyTorch forward (eval mode, empty cache)."""
    wq, bq, wk, bk, wv, bv, wo, bo = params
    B, T, D = query.shape
    H, dk = NUM_HEADS, D_K

    q = (query @ wq + bq).reshape(B, T, H, dk).transpose(0, 2, 1, 3)
    k = (key @ wk + bk).reshape(B, T, H, dk).transpose(0, 2, 1, 3)
    v = (value @ wv + bv).reshape(B, T, H, dk).transpose(0, 2, 1, 3)

    new_cache = jnp.concatenate([k, v], axis=-1)

    scores = jnp.einsum("bhqd,bhkd->bhqk", q, k) / math.sqrt(dk)
    m = (mask[:, None, :, :] == 0)
    scores = jnp.where(m, -jnp.inf, scores)
    attn = jax.nn.softmax(scores, axis=-1)
    attn = jnp.where(m, 0.0, attn)

    out = jnp.einsum("bhqk,bhkd->bhqd", attn, v)
    out = out.transpose(0, 2, 1, 3).reshape(B, T, D)
    out = out @ wo + bo
    return out, new_cache


def init_params(key):
    ks = jax.random.split(key, 8)
    D = ENCODER_DIM
    scale = 0.05
    wq = scale * jax.random.normal(ks[0], (D, D), jnp.float32)
    bq = scale * jax.random.normal(ks[1], (1, D), jnp.float32)
    wk = scale * jax.random.normal(ks[2], (D, D), jnp.float32)
    bk = scale * jax.random.normal(ks[3], (1, D), jnp.float32)
    wv = scale * jax.random.normal(ks[4], (D, D), jnp.float32)
    bv = scale * jax.random.normal(ks[5], (1, D), jnp.float32)
    wo = scale * jax.random.normal(ks[6], (D, D), jnp.float32)
    bo = scale * jax.random.normal(ks[7], (1, D), jnp.float32)
    return (wq, bq, wk, bk, wv, bv, wo, bo)


if __name__ == "__main__":
    root = jax.random.PRNGKey(0)
    k_q, k_k, k_v, k_p = jax.random.split(root, 4)

    query = jax.random.normal(k_q, (BATCH, SEQ, ENCODER_DIM), jnp.float32)
    key_in = jax.random.normal(k_k, (BATCH, SEQ, ENCODER_DIM), jnp.float32)
    value = jax.random.normal(k_v, (BATCH, SEQ, ENCODER_DIM), jnp.float32)

    # Attention mask (B, T_q, T_k): 1 = attend, 0 = masked.  Mask out the last
    # two key positions for the second batch element (no fully-masked rows).
    mask = jnp.ones((BATCH, SEQ, SEQ), jnp.int32)
    mask = mask.at[1, :, SEQ - 2:].set(0)

    params = init_params(k_p)

    out, new_cache = mhsa_forward(query, key_in, value, mask, params)
    out = jax.block_until_ready(out)
    new_cache = jax.block_until_ready(new_cache)

    ref_out, ref_cache = mhsa_reference(query, key_in, value, mask, params)
    assert out.shape == (BATCH, SEQ, ENCODER_DIM)
    assert new_cache.shape == (BATCH, NUM_HEADS, SEQ, 2 * D_K)
    assert jnp.allclose(out, ref_out, atol=1e-4, rtol=1e-4)
    assert jnp.allclose(new_cache, ref_cache, atol=1e-5, rtol=1e-5)

    print("KERNEL_OK")
</pallas_src>

<mosaic_0001>
module attributes {stable_mosaic.version = 11 : i64} {
  func.func @mhsa_kernel(%arg0: i32, %arg1: memref<1x8x32xf32, #tpu.memory_space<vmem>>, %arg2: memref<1x8x32xf32, #tpu.memory_space<vmem>>, %arg3: memref<1x8x32xf32, #tpu.memory_space<vmem>>, %arg4: memref<1x8x8xf32, #tpu.memory_space<vmem>>, %arg5: memref<32x32xf32, #tpu.memory_space<vmem>>, %arg6: memref<1x32xf32, #tpu.memory_space<vmem>>, %arg7: memref<32x32xf32, #tpu.memory_space<vmem>>, %arg8: memref<1x32xf32, #tpu.memory_space<vmem>>, %arg9: memref<32x32xf32, #tpu.memory_space<vmem>>, %arg10: memref<1x32xf32, #tpu.memory_space<vmem>>, %arg11: memref<32x32xf32, #tpu.memory_space<vmem>>, %arg12: memref<1x32xf32, #tpu.memory_space<vmem>>, %arg13: memref<1x8x96xf32, #tpu.memory_space<vmem>>) attributes {dimension_semantics = [#tpu.dimension_semantics<parallel>], iteration_bounds = array<i64: 2>, scalar_prefetch = 0 : i64, scratch_operands = 0 : i64, tpu.core_type = #tpu.core_type<tc>, window_params = [{transform_indices = @transform_0, window_bounds = array<i64: 1, 8, 32>}, {transform_indices = @transform_1, window_bounds = array<i64: 1, 8, 32>}, {transform_indices = @transform_2, window_bounds = array<i64: 1, 8, 32>}, {transform_indices = @transform_3, window_bounds = array<i64: 1, 8, 8>}, {pipeline_mode = #tpu.pipeline_mode<synchronous>, transform_indices = @transform_4, window_bounds = array<i64: 32, 32>}, {pipeline_mode = #tpu.pipeline_mode<synchronous>, transform_indices = @transform_5, window_bounds = array<i64: 1, 32>}, {pipeline_mode = #tpu.pipeline_mode<synchronous>, transform_indices = @transform_6, window_bounds = array<i64: 32, 32>}, {pipeline_mode = #tpu.pipeline_mode<synchronous>, transform_indices = @transform_7, window_bounds = array<i64: 1, 32>}, {pipeline_mode = #tpu.pipeline_mode<synchronous>, transform_indices = @transform_8, window_bounds = array<i64: 32, 32>}, {pipeline_mode = #tpu.pipeline_mode<synchronous>, transform_indices = @transform_9, window_bounds = array<i64: 1, 32>}, {pipeline_mode = #tpu.pipeline_mode<synchronous>, transform_indices = @transform_10, window_bounds = array<i64: 32, 32>}, {pipeline_mode = #tpu.pipeline_mode<synchronous>, transform_indices = @transform_11, window_bounds = array<i64: 1, 32>}, {transform_indices = @transform_12, window_bounds = array<i64: 1, 8, 96>}]} {
    %c0 = arith.constant 0 : index
    %c0_0 = arith.constant 0 : index
    %c0_1 = arith.constant 0 : index
    %0 = vector.load %arg1[%c0, %c0_0, %c0_1] : memref<1x8x32xf32, #tpu.memory_space<vmem>>, vector<1x8x32xf32>
    %1 = vector.shape_cast %0 : vector<1x8x32xf32> to vector<8x32xf32>
    %c0_2 = arith.constant 0 : index
    %c0_3 = arith.constant 0 : index
    %c0_4 = arith.constant 0 : index
    %2 = vector.load %arg2[%c0_2, %c0_3, %c0_4] : memref<1x8x32xf32, #tpu.memory_space<vmem>>, vector<1x8x32xf32>
    %3 = vector.shape_cast %2 : vector<1x8x32xf32> to vector<8x32xf32>
    %c0_5 = arith.constant 0 : index
    %c0_6 = arith.constant 0 : index
    %c0_7 = arith.constant 0 : index
    %4 = vector.load %arg3[%c0_5, %c0_6, %c0_7] : memref<1x8x32xf32, #tpu.memory_space<vmem>>, vector<1x8x32xf32>
    %5 = vector.shape_cast %4 : vector<1x8x32xf32> to vector<8x32xf32>
    %c0_8 = arith.constant 0 : index
    %c0_9 = arith.constant 0 : index
    %6 = vector.load %arg5[%c0_8, %c0_9] : memref<32x32xf32, #tpu.memory_space<vmem>>, vector<32x32xf32>
    %cst = arith.constant dense<0.000000e+00> : vector<8x32xf32>
    %7 = tpu.matmul %1, %6, %cst {dimension_numbers = #tpu.dot_dimension_numbers<[1], [0], [0], [1], [0, 0, 1, 1], [], []>} : vector<8x32xf32>, vector<32x32xf32>, vector<8x32xf32> -> vector<8x32xf32>
    %c0_10 = arith.constant 0 : index
    %c0_11 = arith.constant 0 : index
    %8 = vector.load %arg6[%c0_10, %c0_11] : memref<1x32xf32, #tpu.memory_space<vmem>>, vector<1x32xf32>
    %9 = vector.broadcast %8 : vector<1x32xf32> to vector<8x32xf32>
    %10 = arith.addf %7, %9 : vector<8x32xf32>
    %c0_12 = arith.constant 0 : index
    %c0_13 = arith.constant 0 : index
    %11 = vector.load %arg7[%c0_12, %c0_13] : memref<32x32xf32, #tpu.memory_space<vmem>>, vector<32x32xf32>
    %cst_14 = arith.constant dense<0.000000e+00> : vector<8x32xf32>
    %12 = tpu.matmul %3, %11, %cst_14 {dimension_numbers = #tpu.dot_dimension_numbers<[1], [0], [0], [1], [0, 0, 1, 1], [], []>} : vector<8x32xf32>, vector<32x32xf32>, vector<8x32xf32> -> vector<8x32xf32>
    %c0_15 = arith.constant 0 : index
    %c0_16 = arith.constant 0 : index
    %13 = vector.load %arg8[%c0_15, %c0_16] : memref<1x32xf32, #tpu.memory_space<vmem>>, vector<1x32xf32>
    %14 = vector.broadcast %13 : vector<1x32xf32> to vector<8x32xf32>
    %15 = arith.addf %12, %14 : vector<8x32xf32>
    %c0_17 = arith.constant 0 : index
    %c0_18 = arith.constant 0 : index
    %16 = vector.load %arg9[%c0_17, %c0_18] : memref<32x32xf32, #tpu.memory_space<vmem>>, vector<32x32xf32>
    %cst_19 = arith.constant dense<0.000000e+00> : vector<8x32xf32>
    %17 = tpu.matmul %5, %16, %cst_19 {dimension_numbers = #tpu.dot_dimension_numbers<[1], [0], [0], [1], [0, 0, 1, 1], [], []>} : vector<8x32xf32>, vector<32x32xf32>, vector<8x32xf32> -> vector<8x32xf32>
    %c0_20 = arith.constant 0 : index
    %c0_21 = arith.constant 0 : index
    %18 = vector.load %arg10[%c0_20, %c0_21] : memref<1x32xf32, #tpu.memory_space<vmem>>, vector<1x32xf32>
    %19 = vector.broadcast %18 : vector<1x32xf32> to vector<8x32xf32>
    %20 = arith.addf %17, %19 : vector<8x32xf32>
    %c0_22 = arith.constant 0 : index
    %c0_23 = arith.constant 0 : index
    %c0_24 = arith.constant 0 : index
    %21 = vector.load %arg4[%c0_22, %c0_23, %c0_24] : memref<1x8x8xf32, #tpu.memory_space<vmem>>, vector<1x8x8xf32>
    %22 = vector.shape_cast %21 : vector<1x8x8xf32> to vector<8x8xf32>
    %cst_25 = arith.constant 0.000000e+00 : f32
    %23 = vector.broadcast %cst_25 : f32 to vector<8x32xf32>
    %24 = vector.extract_strided_slice %10 {offsets = [0, 0], sizes = [8, 8], strides = [1, 1]} : vector<8x32xf32> to vector<8x8xf32>
    %25 = vector.extract_strided_slice %15 {offsets = [0, 0], sizes = [8, 8], strides = [1, 1]} : vector<8x32xf32> to vector<8x8xf32>
    %26 = vector.extract_strided_slice %20 {offsets = [0, 0], sizes = [8, 8], strides = [1, 1]} : vector<8x32xf32> to vector<8x8xf32>
    %cst_26 = arith.constant dense<0.000000e+00> : vector<8x8xf32>
    %27 = tpu.matmul %24, %25, %cst_26 {dimension_numbers = #tpu.dot_dimension_numbers<[1], [1], [0], [0], [0, 0, 1, 0], [], []>} : vector<8x8xf32>, vector<8x8xf32>, vector<8x8xf32> -> vector<8x8xf32>
    %cst_27 = arith.constant 0.353553385 : f32
    %28 = vector.broadcast %cst_27 : f32 to vector<8x8xf32>
    %29 = arith.mulf %27, %28 : vector<8x8xf32>
    %30 = arith.addf %29, %22 : vector<8x8xf32>
    %cst_28 = arith.constant dense<0xFF800000> : vector<8xf32>
    %31 = vector.multi_reduction <maximumf>, %30, %cst_28 [1] : vector<8x8xf32> to vector<8xf32>
    %32 = vector.shape_cast %31 : vector<8xf32> to vector<8x1xf32>
    %33 = vector.broadcast %32 : vector<8x1xf32> to vector<8x8xf32>
    %34 = arith.subf %30, %33 : vector<8x8xf32>
    %35 = math.exp %34 : vector<8x8xf32>
    %cst_29 = arith.constant dense<0.000000e+00> : vector<8xf32>
    %36 = vector.multi_reduction <add>, %35, %cst_29 [1] : vector<8x8xf32> to vector<8xf32>
    %37 = vector.shape_cast %36 : vector<8xf32> to vector<8x1xf32>
    %38 = vector.broadcast %37 : vector<8x1xf32> to vector<8x8xf32>
    %39 = arith.divf %35, %38 : vector<8x8xf32>
    %cst_30 = arith.constant dense<0.000000e+00> : vector<8x8xf32>
    %40 = tpu.matmul %39, %26, %cst_30 {dimension_numbers = #tpu.dot_dimension_numbers<[1], [0], [0], [1], [0, 0, 1, 1], [], []>} : vector<8x8xf32>, vector<8x8xf32>, vector<8x8xf32> -> vector<8x8xf32>
    %c0_31 = arith.constant 0 : index
    %c0_32 = arith.constant 0 : index
    %41 = vector.load %arg11[%c0_31, %c0_32] : memref<32x32xf32, #tpu.memory_space<vmem>>, vector<8x32xf32>
    %cst_33 = arith.constant dense<0.000000e+00> : vector<8x32xf32>
    %42 = tpu.matmul %40, %41, %cst_33 {dimension_numbers = #tpu.dot_dimension_numbers<[1], [0], [0], [1], [0, 0, 1, 1], [], []>} : vector<8x8xf32>, vector<8x32xf32>, vector<8x32xf32> -> vector<8x32xf32>
    %43 = arith.addf %23, %42 : vector<8x32xf32>
    %44 = vector.extract_strided_slice %10 {offsets = [0, 8], sizes = [8, 8], strides = [1, 1]} : vector<8x32xf32> to vector<8x8xf32>
    %45 = vector.extract_strided_slice %15 {offsets = [0, 8], sizes = [8, 8], strides = [1, 1]} : vector<8x32xf32> to vector<8x8xf32>
    %46 = vector.extract_strided_slice %20 {offsets = [0, 8], sizes = [8, 8], strides = [1, 1]} : vector<8x32xf32> to vector<8x8xf32>
    %cst_34 = arith.constant dense<0.000000e+00> : vector<8x8xf32>
    %47 = tpu.matmul %44, %45, %cst_34 {dimension_numbers = #tpu.dot_dimension_numbers<[1], [1], [0], [0], [0, 0, 1, 0], [], []>} : vector<8x8xf32>, vector<8x8xf32>, vector<8x8xf32> -> vector<8x8xf32>
    %cst_35 = arith.constant 0.353553385 : f32
    %48 = vector.broadcast %cst_35 : f32 to vector<8x8xf32>
    %49 = arith.mulf %47, %48 : vector<8x8xf32>
    %50 = arith.addf %49, %22 : vector<8x8xf32>
    %cst_36 = arith.constant dense<0xFF800000> : vector<8xf32>
    %51 = vector.multi_reduction <maximumf>, %50, %cst_36 [1] : vector<8x8xf32> to vector<8xf32>
    %52 = vector.shape_cast %51 : vector<8xf32> to vector<8x1xf32>
    %53 = vector.broadcast %52 : vector<8x1xf32> to vector<8x8xf32>
    %54 = arith.subf %50, %53 : vector<8x8xf32>
    %55 = math.exp %54 : vector<8x8xf32>
    %cst_37 = arith.constant dense<0.000000e+00> : vector<8xf32>
    %56 = vector.multi_reduction <add>, %55, %cst_37 [1] : vector<8x8xf32> to vector<8xf32>
    %57 = vector.shape_cast %56 : vector<8xf32> to vector<8x1xf32>
    %58 = vector.broadcast %57 : vector<8x1xf32> to vector<8x8xf32>
    %59 = arith.divf %55, %58 : vector<8x8xf32>
    %cst_38 = arith.constant dense<0.000000e+00> : vector<8x8xf32>
    %60 = tpu.matmul %59, %46, %cst_38 {dimension_numbers = #tpu.dot_dimension_numbers<[1], [0], [0], [1], [0, 0, 1, 1], [], []>} : vector<8x8xf32>, vector<8x8xf32>, vector<8x8xf32> -> vector<8x8xf32>
    %c8 = arith.constant 8 : index
    %c0_39 = arith.constant 0 : index
    %61 = vector.load %arg11[%c8, %c0_39] : memref<32x32xf32, #tpu.memory_space<vmem>>, vector<8x32xf32>
    %cst_40 = arith.constant dense<0.000000e+00> : vector<8x32xf32>
    %62 = tpu.matmul %60, %61, %cst_40 {dimension_numbers = #tpu.dot_dimension_numbers<[1], [0], [0], [1], [0, 0, 1, 1], [], []>} : vector<8x8xf32>, vector<8x32xf32>, vector<8x32xf32> -> vector<8x32xf32>
    %63 = arith.addf %43, %62 : vector<8x32xf32>
    %64 = vector.extract_strided_slice %10 {offsets = [0, 16], sizes = [8, 8], strides = [1, 1]} : vector<8x32xf32> to vector<8x8xf32>
    %65 = vector.extract_strided_slice %15 {offsets = [0, 16], sizes = [8, 8], strides = [1, 1]} : vector<8x32xf32> to vector<8x8xf32>
    %66 = vector.extract_strided_slice %20 {offsets = [0, 16], sizes = [8, 8], strides = [1, 1]} : vector<8x32xf32> to vector<8x8xf32>
    %cst_41 = arith.constant dense<0.000000e+00> : vector<8x8xf32>
    %67 = tpu.matmul %64, %65, %cst_41 {dimension_numbers = #tpu.dot_dimension_numbers<[1], [1], [0], [0], [0, 0, 1, 0], [], []>} : vector<8x8xf32>, vector<8x8xf32>, vector<8x8xf32> -> vector<8x8xf32>
    %cst_42 = arith.constant 0.353553385 : f32
    %68 = vector.broadcast %cst_42 : f32 to vector<8x8xf32>
    %69 = arith.mulf %67, %68 : vector<8x8xf32>
    %70 = arith.addf %69, %22 : vector<8x8xf32>
    %cst_43 = arith.constant dense<0xFF800000> : vector<8xf32>
    %71 = vector.multi_reduction <maximumf>, %70, %cst_43 [1] : vector<8x8xf32> to vector<8xf32>
    %72 = vector.shape_cast %71 : vector<8xf32> to vector<8x1xf32>
    %73 = vector.broadcast %72 : vector<8x1xf32> to vector<8x8xf32>
    %74 = arith.subf %70, %73 : vector<8x8xf32>
    %75 = math.exp %74 : vector<8x8xf32>
    %cst_44 = arith.constant dense<0.000000e+00> : vector<8xf32>
    %76 = vector.multi_reduction <add>, %75, %cst_44 [1] : vector<8x8xf32> to vector<8xf32>
    %77 = vector.shape_cast %76 : vector<8xf32> to vector<8x1xf32>
    %78 = vector.broadcast %77 : vector<8x1xf32> to vector<8x8xf32>
    %79 = arith.divf %75, %78 : vector<8x8xf32>
    %cst_45 = arith.constant dense<0.000000e+00> : vector<8x8xf32>
    %80 = tpu.matmul %79, %66, %cst_45 {dimension_numbers = #tpu.dot_dimension_numbers<[1], [0], [0], [1], [0, 0, 1, 1], [], []>} : vector<8x8xf32>, vector<8x8xf32>, vector<8x8xf32> -> vector<8x8xf32>
    %c16 = arith.constant 16 : index
    %c0_46 = arith.constant 0 : index
    %81 = vector.load %arg11[%c16, %c0_46] : memref<32x32xf32, #tpu.memory_space<vmem>>, vector<8x32xf32>
    %cst_47 = arith.constant dense<0.000000e+00> : vector<8x32xf32>
    %82 = tpu.matmul %80, %81, %cst_47 {dimension_numbers = #tpu.dot_dimension_numbers<[1], [0], [0], [1], [0, 0, 1, 1], [], []>} : vector<8x8xf32>, vector<8x32xf32>, vector<8x32xf32> -> vector<8x32xf32>
    %83 = arith.addf %63, %82 : vector<8x32xf32>
    %84 = vector.extract_strided_slice %10 {offsets = [0, 24], sizes = [8, 8], strides = [1, 1]} : vector<8x32xf32> to vector<8x8xf32>
    %85 = vector.extract_strided_slice %15 {offsets = [0, 24], sizes = [8, 8], strides = [1, 1]} : vector<8x32xf32> to vector<8x8xf32>
    %86 = vector.extract_strided_slice %20 {offsets = [0, 24], sizes = [8, 8], strides = [1, 1]} : vector<8x32xf32> to vector<8x8xf32>
    %cst_48 = arith.constant dense<0.000000e+00> : vector<8x8xf32>
    %87 = tpu.matmul %84, %85, %cst_48 {dimension_numbers = #tpu.dot_dimension_numbers<[1], [1], [0], [0], [0, 0, 1, 0], [], []>} : vector<8x8xf32>, vector<8x8xf32>, vector<8x8xf32> -> vector<8x8xf32>
    %cst_49 = arith.constant 0.353553385 : f32
    %88 = vector.broadcast %cst_49 : f32 to vector<8x8xf32>
    %89 = arith.mulf %87, %88 : vector<8x8xf32>
    %90 = arith.addf %89, %22 : vector<8x8xf32>
    %cst_50 = arith.constant dense<0xFF800000> : vector<8xf32>
    %91 = vector.multi_reduction <maximumf>, %90, %cst_50 [1] : vector<8x8xf32> to vector<8xf32>
    %92 = vector.shape_cast %91 : vector<8xf32> to vector<8x1xf32>
    %93 = vector.broadcast %92 : vector<8x1xf32> to vector<8x8xf32>
    %94 = arith.subf %90, %93 : vector<8x8xf32>
    %95 = math.exp %94 : vector<8x8xf32>
    %cst_51 = arith.constant dense<0.000000e+00> : vector<8xf32>
    %96 = vector.multi_reduction <add>, %95, %cst_51 [1] : vector<8x8xf32> to vector<8xf32>
    %97 = vector.shape_cast %96 : vector<8xf32> to vector<8x1xf32>
    %98 = vector.broadcast %97 : vector<8x1xf32> to vector<8x8xf32>
    %99 = arith.divf %95, %98 : vector<8x8xf32>
    %cst_52 = arith.constant dense<0.000000e+00> : vector<8x8xf32>
    %100 = tpu.matmul %99, %86, %cst_52 {dimension_numbers = #tpu.dot_dimension_numbers<[1], [0], [0], [1], [0, 0, 1, 1], [], []>} : vector<8x8xf32>, vector<8x8xf32>, vector<8x8xf32> -> vector<8x8xf32>
    %c24 = arith.constant 24 : index
    %c0_53 = arith.constant 0 : index
    %101 = vector.load %arg11[%c24, %c0_53] : memref<32x32xf32, #tpu.memory_space<vmem>>, vector<8x32xf32>
    %cst_54 = arith.constant dense<0.000000e+00> : vector<8x32xf32>
    %102 = tpu.matmul %100, %101, %cst_54 {dimension_numbers = #tpu.dot_dimension_numbers<[1], [0], [0], [1], [0, 0, 1, 1], [], []>} : vector<8x8xf32>, vector<8x32xf32>, vector<8x32xf32> -> vector<8x32xf32>
    %103 = arith.addf %83, %102 : vector<8x32xf32>
    %c0_55 = arith.constant 0 : index
    %c0_56 = arith.constant 0 : index
    %104 = vector.load %arg12[%c0_55, %c0_56] : memref<1x32xf32, #tpu.memory_space<vmem>>, vector<1x32xf32>
    %105 = vector.broadcast %104 : vector<1x32xf32> to vector<8x32xf32>
    %106 = arith.addf %103, %105 : vector<8x32xf32>
    %107 = tpu.concatenate %106, %15, %20 in 1 : vector<8x32xf32>, vector<8x32xf32>, vector<8x32xf32> -> vector<8x96xf32>
    %c0_57 = arith.constant 0 : index
    %c0_58 = arith.constant 0 : index
    %c0_59 = arith.constant 0 : index
    %108 = vector.load %arg13[%c0_57, %c0_58, %c0_59] : memref<1x8x96xf32, #tpu.memory_space<vmem>>, vector<1x8x96xf32>
    %109 = vector.shape_cast %108 : vector<1x8x96xf32> to vector<8x96xf32>
    %110 = vector.shape_cast %107 : vector<8x96xf32> to vector<1x8x96xf32>
    tpu.vector_store %arg13[%c0_57, %c0_58, %c0_59], %110 {strides = array<i32>} : memref<1x8x96xf32, #tpu.memory_space<vmem>>, vector<1x8x96xf32>,
    return
  }
  func.func @transform_0(%arg0: i32) -> (i32, i32, i32) {
    %c0_i32 = arith.constant 0 : i32
    %c0_i32_0 = arith.constant 0 : i32
    %c0_i32_1 = arith.constant 0 : i32
    return %arg0, %c0_i32, %c0_i32_0 : i32, i32, i32
  }
  func.func @transform_1(%arg0: i32) -> (i32, i32, i32) {
    %c0_i32 = arith.constant 0 : i32
    %c0_i32_0 = arith.constant 0 : i32
    %c0_i32_1 = arith.constant 0 : i32
    return %arg0, %c0_i32, %c0_i32_0 : i32, i32, i32
  }
  func.func @transform_2(%arg0: i32) -> (i32, i32, i32) {
    %c0_i32 = arith.constant 0 : i32
    %c0_i32_0 = arith.constant 0 : i32
    %c0_i32_1 = arith.constant 0 : i32
    return %arg0, %c0_i32, %c0_i32_0 : i32, i32, i32
  }
  func.func @transform_3(%arg0: i32) -> (i32, i32, i32) {
    %c0_i32 = arith.constant 0 : i32
    %c0_i32_0 = arith.constant 0 : i32
    %c0_i32_1 = arith.constant 0 : i32
    return %arg0, %c0_i32, %c0_i32_0 : i32, i32, i32
  }
  func.func @transform_4(%arg0: i32) -> (i32, i32) {
    %c0_i32 = arith.constant 0 : i32
    %c0_i32_0 = arith.constant 0 : i32
    %c0_i32_1 = arith.constant 0 : i32
    return %c0_i32, %c0_i32_0 : i32, i32
  }
  func.func @transform_5(%arg0: i32) -> (i32, i32) {
    %c0_i32 = arith.constant 0 : i32
    %c0_i32_0 = arith.constant 0 : i32
    %c0_i32_1 = arith.constant 0 : i32
    return %c0_i32, %c0_i32_0 : i32, i32
  }
  func.func @transform_6(%arg0: i32) -> (i32, i32) {
    %c0_i32 = arith.constant 0 : i32
    %c0_i32_0 = arith.constant 0 : i32
    %c0_i32_1 = arith.constant 0 : i32
    return %c0_i32, %c0_i32_0 : i32, i32
  }
  func.func @transform_7(%arg0: i32) -> (i32, i32) {
    %c0_i32 = arith.constant 0 : i32
    %c0_i32_0 = arith.constant 0 : i32
    %c0_i32_1 = arith.constant 0 : i32
    return %c0_i32, %c0_i32_0 : i32, i32
  }
  func.func @transform_8(%arg0: i32) -> (i32, i32) {
    %c0_i32 = arith.constant 0 : i32
    %c0_i32_0 = arith.constant 0 : i32
    %c0_i32_1 = arith.constant 0 : i32
    return %c0_i32, %c0_i32_0 : i32, i32
  }
  func.func @transform_9(%arg0: i32) -> (i32, i32) {
    %c0_i32 = arith.constant 0 : i32
    %c0_i32_0 = arith.constant 0 : i32
    %c0_i32_1 = arith.constant 0 : i32
    return %c0_i32, %c0_i32_0 : i32, i32
  }
  func.func @transform_10(%arg0: i32) -> (i32, i32) {
    %c0_i32 = arith.constant 0 : i32
    %c0_i32_0 = arith.constant 0 : i32
    %c0_i32_1 = arith.constant 0 : i32
    return %c0_i32, %c0_i32_0 : i32, i32
  }
  func.func @transform_11(%arg0: i32) -> (i32, i32) {
    %c0_i32 = arith.constant 0 : i32
    %c0_i32_0 = arith.constant 0 : i32
    %c0_i32_1 = arith.constant 0 : i32
    return %c0_i32, %c0_i32_0 : i32, i32
  }
  func.func @transform_12(%arg0: i32) -> (i32, i32, i32) {
    %c0_i32 = arith.constant 0 : i32
    %c0_i32_0 = arith.constant 0 : i32
    %c0_i32_1 = arith.constant 0 : i32
    return %arg0, %c0_i32, %c0_i32_0 : i32, i32, i32
  }
}

</mosaic_0001>

<llo_original>
// kernel: tpu_custom_call.1
$region0: #{tpu_custom_call.1}
  #allocation0 [shape = 'u32[]', space=smem, size = 0x4, offset = 0x4, fixed_abs, tag = 'smem constant byte address 0x4 - core index']
  #allocation1 [shape = 'u32[144,128]{1,0:T(1,128)}', space=vmem, size = 0x12000, scoped, tag = 'internal scratch']
  %s0 = inlined_call_operand.hbm [shape: f32[2,8,32], index: 0, kind: input, shape index: {}]
  %s1 = inlined_call_operand.hbm [shape: f32[2,8,32], index: 1, kind: input, shape index: {}]
  %s2 = inlined_call_operand.hbm [shape: f32[2,8,32], index: 2, kind: input, shape index: {}]
  %s3 = inlined_call_operand.hbm [shape: f32[2,8,8], index: 3, kind: input, shape index: {}]
  %s4 = inlined_call_operand.hbm [shape: f32[32,32], index: 4, kind: input, shape index: {}]
  %s5 = inlined_call_operand.vmem [shape: f32[1,32], index: 5, kind: input, shape index: {}]
  %s6 = inlined_call_operand.hbm [shape: f32[32,32], index: 6, kind: input, shape index: {}]
  %s7 = inlined_call_operand.vmem [shape: f32[1,32], index: 7, kind: input, shape index: {}]
  %s8 = inlined_call_operand.hbm [shape: f32[32,32], index: 8, kind: input, shape index: {}]
  %s9 = inlined_call_operand.vmem [shape: f32[1,32], index: 9, kind: input, shape index: {}]
  %s10 = inlined_call_operand.vmem [shape: f32[32,32], index: 10, kind: input, shape index: {}]
  %s11 = inlined_call_operand.vmem [shape: f32[1,32], index: 11, kind: input, shape index: {}]
  %s12 = inlined_call_operand.hbm [shape: f32[2,8,96], index: 12, kind: output, shape index: {}]
  %s13 = sld [smem:[#allocation0]]
  $region109: #{tpu_custom_call.1} parent=0
    _
  %s15 = ssub.s32 1, %s13
  %s16 = scalar_select 0, %s15, %s13
  $region1: #{tpu_custom_call.1} parent=0
    #allocation2 [shape = 'u8[8192]{0}', space=vmem, size = 0x2000, scoped, tag = 'input window, operand 0']
    #allocation3 [shape = 's32[2]{0}', space=sflag, size = 0x8, scoped, tag = 'scoped memory for tpu_custom_call.1']
    #allocation4 [shape = 's32[2]{0}', space=sflag, size = 0x8, scoped, tag = 'scoped memory for tpu_custom_call.1']
    #allocation5 [shape = 'u8[8192]{0}', space=vmem, size = 0x2000, scoped, tag = 'input window, operand 1']
    #allocation6 [shape = 's32[2]{0}', space=sflag, size = 0x8, scoped, tag = 'scoped memory for tpu_custom_call.1']
    #allocation7 [shape = 'u8[8192]{0}', space=vmem, size = 0x2000, scoped, tag = 'input window, operand 2']
    #allocation8 [shape = 'u8[8192]{0}', space=vmem, size = 0x2000, scoped, tag = 'input window, operand 3']
    #allocation9 [shape = 's32[2]{0}', space=sflag, size = 0x8, scoped, tag = 'scoped memory for tpu_custom_call.1']
    #allocation10 [shape = 'u8[16384]{0}', space=vmem, size = 0x4000, scoped, tag = 'input window, operand 4, single buffered']
    #allocation11 [shape = 'u8[16384]{0}', space=vmem, size = 0x4000, scoped, tag = 'input window, operand 6, single buffered']
    #allocation12 [shape = 's32[1]{0}', space=sflag, size = 0x4, scoped, tag = 'scoped memory for tpu_custom_call.1']
    #allocation13 [shape = 'u8[16384]{0}', space=vmem, size = 0x4000, scoped, tag = 'input window, operand 8, single buffered']
    #allocation14 [shape = 'u8[8192]{0}', space=vmem, size = 0x2000, scoped, tag = 'output window, operand 0']
    %17 = vsyncpa [#allocation3], 0
    %s18 = scalar_lea.sflag [#allocation3], 1
    %19 = vsyncpa %s18, 0
    %20 = vsyncpa [#allocation6], 0
    %s21 = scalar_lea.sflag [#allocation6], 1
    %22 = vsyncpa %s21, 0
    %23 = vsyncpa [#allocation9], 0
    %s24 = scalar_lea.sflag [#allocation9], 1
    %25 = vsyncpa %s24, 0
    %26 = vsyncpa [#allocation12], 0
    %27 = vsyncpa [#allocation4], 0
    %s28 = scalar_lea.sflag [#allocation4], 1
    %29 = vsyncpa %s28, 0
    loop: start=0, step=1, limit=4
    $region2: #{tpu_custom_call.1} parent=1 // loop_pre_header
      _
    $region3: #{tpu_custom_call.1} parent=1 // loop_header
      %s31 = sphi 0, %s35
      %p32 = scmp.ge.s32.totalorder %s31, 4
      %s41 = sphi 0, %s43
      %s44 = sphi 0, %s41
      %s45 = sphi 0, %s44
      %s61 = sphi 0, %s45
      %s67 = sphi 0, %s69
      %s70 = sphi 0, %s67
      %s71 = sphi 0, %s70
      %s87 = sphi 0, %s71
      %s93 = sphi 0, %s95
      %s96 = sphi 0, %s93
      %s97 = sphi 0, %s96
      %s113 = sphi 0, %s97
      %s119 = sphi 0, %s121
      %s122 = sphi 0, %s119
      %s123 = sphi 0, %s122
      %s139 = sphi 0, %s123
      %s143 = sphi 0, %s143
      %s145 = sphi 0, %s143
      %s146 = sphi 0, %s145
      %s160 = sphi 0, %s146
      %s164 = sphi 0, %s164
      %s166 = sphi 0, %s164
      %s167 = sphi 0, %s166
      %s181 = sphi 0, %s167
      %s185 = sphi 0, %s185
      %s187 = sphi 0, %s185
      %s188 = sphi 0, %s187
      %s202 = sphi 0, %s188
      %s206 = sphi 0, %s206
      %s208 = sphi 0, %s206
      %s209 = sphi 0, %s208
      %s223 = sphi 0, %s209
      %s227 = sphi 0, %s227
      %s229 = sphi 0, %s227
      %s230 = sphi 0, %s229
      %s244 = sphi 0, %s230
      %s248 = sphi 0, %s248
      %s250 = sphi 0, %s248
      %s251 = sphi 0, %s250
      %s265 = sphi 0, %s251
      %s269 = sphi 0, %s269
      %s271 = sphi 0, %s269
      %s272 = sphi 0, %s271
      %s286 = sphi 0, %s272
      %s290 = sphi 0, %s290
      %s292 = sphi 0, %s290
      %s293 = sphi 0, %s292
      %s307 = sphi 0, %s293
      %s313 = sphi 0, %s315
      %s316 = sphi 0, %s313
      %s317 = sphi 0, %s316
      %s333 = sphi 0, %s317
    $region4: #{tpu_custom_call.1} parent=1 // loop_header_branch
      %34 = sbr.rel (%p32) target = $region8
    $region5: #{tpu_custom_call.1} parent=1 // loop_body
      %s36 = ssub.s32 %s31, 1
      %s37 = ssub.s32 %s31, 2
      %s38 = sadd.s32 %s31, 1
      %s39 = ssub.s32 %s31, %s38
      %p40 = scmp.eq.s32.totalorder %s39, 0
      %s42 = sadd.s32 %s41, 1
      %s43 = scalar_select %p40, %s41, %s42
      %p46 = pneg %p40
      %p47 = scmp.eq.s32.totalorder %s31, 1
      %p48 = por %p46, %p47
      %p49 = scmp.ne.s32.totalorder %s41, %s44
      %p50 = scmp.eq.s32.totalorder %s31, 0
      %p51 = por %p49, %p50
      %p52 = scmp.ne.s32.totalorder %s41, %s44
      %p53 = scmp.eq.s32.totalorder %s36, 1
      %p54 = por %p52, %p53
      %p55 = scmp.ne.s32.totalorder %s44, %s45
      %p56 = scmp.eq.s32.totalorder %s36, 0
      %p57 = por %p55, %p56
      %p58 = scmp.ne.s32.totalorder %s44, %s45
      %p59 = scmp.eq.s32.totalorder %s37, 1
      %p60 = por %p58, %p59
      %p62 = scmp.ne.s32.totalorder %s45, %s61
      %p63 = scmp.eq.s32.totalorder %s37, 0
      %p64 = por %p62, %p63
      %s65 = ssub.s32 %s31, %s38
      %p66 = scmp.eq.s32.totalorder %s65, 0
      %s68 = sadd.s32 %s67, 1
      %s69 = scalar_select %p66, %s67, %s68
      %p72 = pneg %p66
      %p73 = scmp.eq.s32.totalorder %s31, 1
      %p74 = por %p72, %p73
      %p75 = scmp.ne.s32.totalorder %s67, %s70
      %p76 = scmp.eq.s32.totalorder %s31, 0
      %p77 = por %p75, %p76
      %p78 = scmp.ne.s32.totalorder %s67, %s70
      %p79 = scmp.eq.s32.totalorder %s36, 1
      %p80 = por %p78, %p79
      %p81 = scmp.ne.s32.totalorder %s70, %s71
      %p82 = scmp.eq.s32.totalorder %s36, 0
      %p83 = por %p81, %p82
      %p84 = scmp.ne.s32.totalorder %s70, %s71
      %p85 = scmp.eq.s32.totalorder %s37, 1
      %p86 = por %p84, %p85
      %p88 = scmp.ne.s32.totalorder %s71, %s87
      %p89 = scmp.eq.s32.totalorder %s37, 0
      %p90 = por %p88, %p89
      %s91 = ssub.s32 %s31, %s38
      %p92 = scmp.eq.s32.totalorder %s91, 0
      %s94 = sadd.s32 %s93, 1
      %s95 = scalar_select %p92, %s93, %s94
      %p98 = pneg %p92
      %p99 = scmp.eq.s32.totalorder %s31, 1
      %p100 = por %p98, %p99
      %p101 = scmp.ne.s32.totalorder %s93, %s96
      %p102 = scmp.eq.s32.totalorder %s31, 0
      %p103 = por %p101, %p102
      %p104 = scmp.ne.s32.totalorder %s93, %s96
      %p105 = scmp.eq.s32.totalorder %s36, 1
      %p106 = por %p104, %p105
      %p107 = scmp.ne.s32.totalorder %s96, %s97
      %p108 = scmp.eq.s32.totalorder %s36, 0
      %p109 = por %p107, %p108
      %p110 = scmp.ne.s32.totalorder %s96, %s97
      %p111 = scmp.eq.s32.totalorder %s37, 1
      %p112 = por %p110, %p111
      %p114 = scmp.ne.s32.totalorder %s97, %s113
      %p115 = scmp.eq.s32.totalorder %s37, 0
      %p116 = por %p114, %p115
      %s117 = ssub.s32 %s31, %s38
      %p118 = scmp.eq.s32.totalorder %s117, 0
      %s120 = sadd.s32 %s119, 1
      %s121 = scalar_select %p118, %s119, %s120
      %p124 = pneg %p118
      %p125 = scmp.eq.s32.totalorder %s31, 1
      %p126 = por %p124, %p125
      %p127 = scmp.ne.s32.totalorder %s119, %s122
      %p128 = scmp.eq.s32.totalorder %s31, 0
      %p129 = por %p127, %p128
      %p130 = scmp.ne.s32.totalorder %s119, %s122
      %p131 = scmp.eq.s32.totalorder %s36, 1
      %p132 = por %p130, %p131
      %p133 = scmp.ne.s32.totalorder %s122, %s123
      %p134 = scmp.eq.s32.totalorder %s36, 0
      %p135 = por %p133, %p134
      %p136 = scmp.ne.s32.totalorder %s122, %s123
      %p137 = scmp.eq.s32.totalorder %s37, 1
      %p138 = por %p136, %p137
      %p140 = scmp.ne.s32.totalorder %s123, %s139
      %p141 = scmp.eq.s32.totalorder %s37, 0
      %p142 = por %p140, %p141
      %s144 = sadd.s32 %s143, 1
      %p147 = scmp.eq.s32.totalorder %s31, 1
      %p148 = scmp.ne.s32.totalorder %s143, %s145
      %p149 = scmp.eq.s32.totalorder %s31, 0
      %p150 = por %p148, %p149
      %p151 = scmp.ne.s32.totalorder %s143, %s145
      %p152 = scmp.eq.s32.totalorder %s36, 1
      %p153 = por %p151, %p152
      %p154 = scmp.ne.s32.totalorder %s145, %s146
      %p155 = scmp.eq.s32.totalorder %s36, 0
      %p156 = por %p154, %p155
      %p157 = scmp.ne.s32.totalorder %s145, %s146
      %p158 = scmp.eq.s32.totalorder %s37, 1
      %p159 = por %p157, %p158
      %p161 = scmp.ne.s32.totalorder %s146, %s160
      %p162 = scmp.eq.s32.totalorder %s37, 0
      %p163 = por %p161, %p162
      %s165 = sadd.s32 %s164, 1
      %p168 = scmp.eq.s32.totalorder %s31, 1
      %p169 = scmp.ne.s32.totalorder %s164, %s166
      %p170 = scmp.eq.s32.totalorder %s31, 0
      %p171 = por %p169, %p170
      %p172 = scmp.ne.s32.totalorder %s164, %s166
      %p173 = scmp.eq.s32.totalorder %s36, 1
      %p174 = por %p172, %p173
      %p175 = scmp.ne.s32.totalorder %s166, %s167
      %p176 = scmp.eq.s32.totalorder %s36, 0
      %p177 = por %p175, %p176
      %p178 = scmp.ne.s32.totalorder %s166, %s167
      %p179 = scmp.eq.s32.totalorder %s37, 1
      %p180 = por %p178, %p179
      %p182 = scmp.ne.s32.totalorder %s167, %s181
      %p183 = scmp.eq.s32.totalorder %s37, 0
      %p184 = por %p182, %p183
      %s186 = sadd.s32 %s185, 1
      %p189 = scmp.eq.s32.totalorder %s31, 1
      %p190 = scmp.ne.s32.totalorder %s185, %s187
      %p191 = scmp.eq.s32.totalorder %s31, 0
      %p192 = por %p190, %p191
      %p193 = scmp.ne.s32.totalorder %s185, %s187
      %p194 = scmp.eq.s32.totalorder %s36, 1
      %p195 = por %p193, %p194
      %p196 = scmp.ne.s32.totalorder %s187, %s188
      %p197 = scmp.eq.s32.totalorder %s36, 0
      %p198 = por %p196, %p197
      %p199 = scmp.ne.s32.totalorder %s187, %s188
      %p200 = scmp.eq.s32.totalorder %s37, 1
      %p201 = por %p199, %p200
      %p203 = scmp.ne.s32.totalorder %s188, %s202
      %p204 = scmp.eq.s32.totalorder %s37, 0
      %p205 = por %p203, %p204
      %s207 = sadd.s32 %s206, 1
      %p210 = scmp.eq.s32.totalorder %s31, 1
      %p211 = scmp.ne.s32.totalorder %s206, %s208
      %p212 = scmp.eq.s32.totalorder %s31, 0
      %p213 = por %p211, %p212
      %p214 = scmp.ne.s32.totalorder %s206, %s208
      %p215 = scmp.eq.s32.totalorder %s36, 1
      %p216 = por %p214, %p215
      %p217 = scmp.ne.s32.totalorder %s208, %s209
      %p218 = scmp.eq.s32.totalorder %s36, 0
      %p219 = por %p217, %p218
      %p220 = scmp.ne.s32.totalorder %s208, %s209
      %p221 = scmp.eq.s32.totalorder %s37, 1
      %p222 = por %p220, %p221
      %p224 = scmp.ne.s32.totalorder %s209, %s223
      %p225 = scmp.eq.s32.totalorder %s37, 0
      %p226 = por %p224, %p225
      %s228 = sadd.s32 %s227, 1
      %p231 = scmp.eq.s32.totalorder %s31, 1
      %p232 = scmp.ne.s32.totalorder %s227, %s229
      %p233 = scmp.eq.s32.totalorder %s31, 0
      %p234 = por %p232, %p233
      %p235 = scmp.ne.s32.totalorder %s227, %s229
      %p236 = scmp.eq.s32.totalorder %s36, 1
      %p237 = por %p235, %p236
      %p238 = scmp.ne.s32.totalorder %s229, %s230
      %p239 = scmp.eq.s32.totalorder %s36, 0
      %p240 = por %p238, %p239
      %p241 = scmp.ne.s32.totalorder %s229, %s230
      %p242 = scmp.eq.s32.totalorder %s37, 1
      %p243 = por %p241, %p242
      %p245 = scmp.ne.s32.totalorder %s230, %s244
      %p246 = scmp.eq.s32.totalorder %s37, 0
      %p247 = por %p245, %p246
      %s249 = sadd.s32 %s248, 1
      %p252 = scmp.eq.s32.totalorder %s31, 1
      %p253 = scmp.ne.s32.totalorder %s248, %s250
      %p254 = scmp.eq.s32.totalorder %s31, 0
      %p255 = por %p253, %p254
      %p256 = scmp.ne.s32.totalorder %s248, %s250
      %p257 = scmp.eq.s32.totalorder %s36, 1
      %p258 = por %p256, %p257
      %p259 = scmp.ne.s32.totalorder %s250, %s251
      %p260 = scmp.eq.s32.totalorder %s36, 0
      %p261 = por %p259, %p260
      %p262 = scmp.ne.s32.totalorder %s250, %s251
      %p263 = scmp.eq.s32.totalorder %s37, 1
      %p264 = por %p262, %p263
      %p266 = scmp.ne.s32.totalorder %s251, %s265
      %p267 = scmp.eq.s32.totalorder %s37, 0
      %p268 = por %p266, %p267
      %s270 = sadd.s32 %s269, 1
      %p273 = scmp.eq.s32.totalorder %s31, 1
      %p274 = scmp.ne.s32.totalorder %s269, %s271
      %p275 = scmp.eq.s32.totalorder %s31, 0
      %p276 = por %p274, %p275
      %p277 = scmp.ne.s32.totalorder %s269, %s271
      %p278 = scmp.eq.s32.totalorder %s36, 1
      %p279 = por %p277, %p278
      %p280 = scmp.ne.s32.totalorder %s271, %s272
      %p281 = scmp.eq.s32.totalorder %s36, 0
      %p282 = por %p280, %p281
      %p283 = scmp.ne.s32.totalorder %s271, %s272
      %p284 = scmp.eq.s32.totalorder %s37, 1
      %p285 = por %p283, %p284
      %p287 = scmp.ne.s32.totalorder %s272, %s286
      %p288 = scmp.eq.s32.totalorder %s37, 0
      %p289 = por %p287, %p288
      %s291 = sadd.s32 %s290, 1
      %p294 = scmp.eq.s32.totalorder %s31, 1
      %p295 = scmp.ne.s32.totalorder %s290, %s292
      %p296 = scmp.eq.s32.totalorder %s31, 0
      %p297 = por %p295, %p296
      %p298 = scmp.ne.s32.totalorder %s290, %s292
      %p299 = scmp.eq.s32.totalorder %s36, 1
      %p300 = por %p298, %p299
      %p301 = scmp.ne.s32.totalorder %s292, %s293
      %p302 = scmp.eq.s32.totalorder %s36, 0
      %p303 = por %p301, %p302
      %p304 = scmp.ne.s32.totalorder %s292, %s293
      %p305 = scmp.eq.s32.totalorder %s37, 1
      %p306 = por %p304, %p305
      %p308 = scmp.ne.s32.totalorder %s293, %s307
      %p309 = scmp.eq.s32.totalorder %s37, 0
      %p310 = por %p308, %p309
      %s311 = ssub.s32 %s31, %s38
      %p312 = scmp.eq.s32.totalorder %s311, 0
      %s314 = sadd.s32 %s313, 1
      %s315 = scalar_select %p312, %s313, %s314
      %p318 = pneg %p312
      %p319 = scmp.eq.s32.totalorder %s31, 1
      %p320 = por %p318, %p319
      %p321 = scmp.ne.s32.totalorder %s313, %s316
      %p322 = scmp.eq.s32.totalorder %s31, 0
      %p323 = por %p321, %p322
      %p324 = scmp.ne.s32.totalorder %s313, %s316
      %p325 = scmp.eq.s32.totalorder %s36, 1
      %p326 = por %p324, %p325
      %p327 = scmp.ne.s32.totalorder %s316, %s317
      %p328 = scmp.eq.s32.totalorder %s36, 0
      %p329 = por %p327, %p328
      %p330 = scmp.ne.s32.totalorder %s316, %s317
      %p331 = scmp.eq.s32.totalorder %s37, 1
      %p332 = por %p330, %p331
      %p334 = scmp.ne.s32.totalorder %s317, %s333
      %p335 = scmp.eq.s32.totalorder %s37, 0
      %p336 = por %p334, %p335
      %p337 = scmp.le.s32.totalorder 1, %s31
      %p338 = scmp.lt.s32.totalorder %s31, 3
      %p339 = pnand %p337, %p338
      %p340 = pneg %p339
      // Predicated region
      $region9: #{tpu_custom_call.1} parent=5 // pred_check
        _
      $region10: #{tpu_custom_call.1} parent=5 // pred_check_branch
        %342 = sbr.rel (%p339) target = $region12
      $region11: #{tpu_custom_call.1} parent=5 // pred_region
        %s343 = ssub.s32 %s31, 1
        // Predicated region
        $region13: #{tpu_custom_call.1} parent=11 // pred_check
          %p344 = pneg %p156
        $region14: #{tpu_custom_call.1} parent=11 // pred_check_branch
          %346 = sbr.rel (%p344) target = $region16
        $region15: #{tpu_custom_call.1} parent=11 // pred_region
          %s348 = ssub.s32 512, 512
          %349 = vsyncadd [#allocation9], %s348
          %s350 = sshll.u32 [#allocation10], 4
          %s351 = int_to_ptr.vmem [resolvable:$true] %s350
          %356 = dma.hbm_to_vmem [thread:$0]  %s4, 512, %s351, [#allocation9], 128, 128, 8
        $region16: #{tpu_custom_call.1} parent=11 // pred_fallthru
          _
        // Predicated region
        $region17: #{tpu_custom_call.1} parent=11 // pred_check
          %p357 = pneg %p177
        $region18: #{tpu_custom_call.1} parent=11 // pred_check_branch
          %359 = sbr.rel (%p357) target = $region20
        $region19: #{tpu_custom_call.1} parent=11 // pred_region
          _
        $region20: #{tpu_custom_call.1} parent=11 // pred_fallthru
          _
        // Predicated region
        $region21: #{tpu_custom_call.1} parent=11 // pred_check
          %p360 = pneg %p198
        $region22: #{tpu_custom_call.1} parent=11 // pred_check_branch
          %362 = sbr.rel (%p360) target = $region24
        $region23: #{tpu_custom_call.1} parent=11 // pred_region
          %s364 = ssub.s32 512, 512
          %365 = vsyncadd [#allocation12], %s364
          %s366 = sshll.u32 [#allocation11], 4
          %s367 = int_to_ptr.vmem [resolvable:$true] %s366
          %372 = dma.hbm_to_vmem [thread:$0]  %s6, 512, %s367, [#allocation12], 128, 128, 8
        $region24: #{tpu_custom_call.1} parent=11 // pred_fallthru
          _
        // Predicated region
        $region25: #{tpu_custom_call.1} parent=11 // pred_check
          %p373 = pneg %p219
        $region26: #{tpu_custom_call.1} parent=11 // pred_check_branch
          %375 = sbr.rel (%p373) target = $region28
        $region27: #{tpu_custom_call.1} parent=11 // pred_region
          _
        $region28: #{tpu_custom_call.1} parent=11 // pred_fallthru
          _
        // Predicated region
        $region29: #{tpu_custom_call.1} parent=11 // pred_check
          %p376 = pneg %p240
        $region30: #{tpu_custom_call.1} parent=11 // pred_check_branch
          %378 = sbr.rel (%p376) target = $region32
        $region31: #{tpu_custom_call.1} parent=11 // pred_region
          %s380 = ssub.s32 512, 512
          %381 = vsyncadd [#allocation12], %s380
          %s382 = sshll.u32 [#allocation13], 4
          %s383 = int_to_ptr.vmem [resolvable:$true] %s382
          %388 = dma.hbm_to_vmem [thread:$0]  %s8, 512, %s383, [#allocation12], 128, 128, 8
        $region32: #{tpu_custom_call.1} parent=11 // pred_fallthru
          _
        // Predicated region
        $region33: #{tpu_custom_call.1} parent=11 // pred_check
          %p389 = pneg %p261
        $region34: #{tpu_custom_call.1} parent=11 // pred_check_branch
          %391 = sbr.rel (%p389) target = $region36
        $region35: #{tpu_custom_call.1} parent=11 // pred_region
          _
        $region36: #{tpu_custom_call.1} parent=11 // pred_fallthru
          _
        // Predicated region
        $region37: #{tpu_custom_call.1} parent=11 // pred_check
          %p392 = pneg %p282
        $region38: #{tpu_custom_call.1} parent=11 // pred_check_branch
          %394 = sbr.rel (%p392) target = $region40
        $region39: #{tpu_custom_call.1} parent=11 // pred_region
          _
        $region40: #{tpu_custom_call.1} parent=11 // pred_fallthru
          _
        // Predicated region
        $region41: #{tpu_custom_call.1} parent=11 // pred_check
          %p395 = pneg %p303
        $region42: #{tpu_custom_call.1} parent=11 // pred_check_branch
          %397 = sbr.rel (%p395) target = $region44
        $region43: #{tpu_custom_call.1} parent=11 // pred_region
          _
        $region44: #{tpu_custom_call.1} parent=11 // pred_fallthru
          _
      $region12: #{tpu_custom_call.1} parent=5 // pred_fallthru
        _
      %p398 = scmp.lt.s32.totalorder %s31, 2
      // Predicated region
      $region45: #{tpu_custom_call.1} parent=5 // pred_check
        %p399 = pneg %p398
      $region46: #{tpu_custom_call.1} parent=5 // pred_check_branch
        %401 = sbr.rel (%p399) target = $region48
      $region47: #{tpu_custom_call.1} parent=5 // pred_region
        // Predicated region
        $region49: #{tpu_custom_call.1} parent=47 // pred_check
          %p402 = pneg %p51
        $region50: #{tpu_custom_call.1} parent=47 // pred_check_branch
          %404 = sbr.rel (%p402) target = $region52
        $region51: #{tpu_custom_call.1} parent=47 // pred_region
          %s405 = sand.u32 %s41, 1
          %s406 = scalar_lea.sflag [#allocation3], %s405
          %s407 = sand.u32 %s41, 1
          %s408 = smul.addr %s407, 8
          %s409 = scalar_lea.vmem [#allocation2], %s408
          %s411 = ssub.s32 128, 128
          %412 = vsyncadd %s406, %s411
          %s413 = smul.addr %s31, 128
          %s414 = scalar_lea.hbm %s0, %s413
          %s416 = sshll.u32 %s409, 4
          %s417 = int_to_ptr.vmem [resolvable:$true] %s416
          %419 = dma.hbm_to_vmem [thread:$0]  %s414, 128, %s417, %s406
        $region52: #{tpu_custom_call.1} parent=47 // pred_fallthru
          _
        // Predicated region
        $region53: #{tpu_custom_call.1} parent=47 // pred_check
          %p420 = pneg %p77
        $region54: #{tpu_custom_call.1} parent=47 // pred_check_branch
          %422 = sbr.rel (%p420) target = $region56
        $region55: #{tpu_custom_call.1} parent=47 // pred_region
          %s423 = sand.u32 %s31, 1
          %s424 = scalar_lea.sflag [#allocation6], %s423
          %s425 = sand.u32 %s67, 1
          %s426 = smul.addr %s425, 8
          %s427 = scalar_lea.vmem [#allocation5], %s426
          %s429 = ssub.s32 128, 128
          %430 = vsyncadd %s424, %s429
          %s431 = smul.addr %s31, 128
          %s432 = scalar_lea.hbm %s1, %s431
          %s434 = sshll.u32 %s427, 4
          %s435 = int_to_ptr.vmem [resolvable:$true] %s434
          %437 = dma.hbm_to_vmem [thread:$0]  %s432, 128, %s435, %s424
        $region56: #{tpu_custom_call.1} parent=47 // pred_fallthru
          _
        // Predicated region
        $region57: #{tpu_custom_call.1} parent=47 // pred_check
          %p438 = pneg %p103
        $region58: #{tpu_custom_call.1} parent=47 // pred_check_branch
          %440 = sbr.rel (%p438) target = $region60
        $region59: #{tpu_custom_call.1} parent=47 // pred_region
          %s441 = sand.u32 %s31, 1
          %s442 = scalar_lea.sflag [#allocation6], %s441
          %s443 = sand.u32 %s93, 1
          %s444 = smul.addr %s443, 8
          %s445 = scalar_lea.vmem [#allocation7], %s444
          %s447 = ssub.s32 128, 128
          %448 = vsyncadd %s442, %s447
          %s449 = smul.addr %s31, 128
          %s450 = scalar_lea.hbm %s2, %s449
          %s452 = sshll.u32 %s445, 4
          %s453 = int_to_ptr.vmem [resolvable:$true] %s452
          %455 = dma.hbm_to_vmem [thread:$0]  %s450, 128, %s453, %s442
        $region60: #{tpu_custom_call.1} parent=47 // pred_fallthru
          _
        // Predicated region
        $region61: #{tpu_custom_call.1} parent=47 // pred_check
          %p456 = pneg %p129
        $region62: #{tpu_custom_call.1} parent=47 // pred_check_branch
          %458 = sbr.rel (%p456) target = $region64
        $region63: #{tpu_custom_call.1} parent=47 // pred_region
          %s459 = sand.u32 %s31, 1
          %s460 = scalar_lea.sflag [#allocation9], %s459
          %s461 = sand.u32 %s119, 1
          %s462 = smul.addr %s461, 8
          %s463 = scalar_lea.vmem [#allocation8], %s462
          %s465 = ssub.s32 128, 128
          %466 = vsyncadd %s460, %s465
          %s467 = smul.addr %s31, 128
          %s468 = scalar_lea.hbm %s3, %s467
          %s470 = sshll.u32 %s463, 4
          %s471 = int_to_ptr.vmem [resolvable:$true] %s470
          %473 = dma.hbm_to_vmem [thread:$0]  %s468, 128, %s471, %s460
        $region64: #{tpu_custom_call.1} parent=47 // pred_fallthru
          _
      $region48: #{tpu_custom_call.1} parent=5 // pred_fallthru
        _
      %p474 = scmp.le.s32.totalorder 1, %s31
      %p475 = scmp.lt.s32.totalorder %s31, 3
      %p476 = pnand %p474, %p475
      %p477 = pneg %p476
      // Predicated region
      $region65: #{tpu_custom_call.1} parent=5 // pred_check
        _
      $region66: #{tpu_custom_call.1} parent=5 // pred_check_branch
        %479 = sbr.rel (%p476) target = $region68
      $region67: #{tpu_custom_call.1} parent=5 // pred_region
        %s480 = ssub.s32 %s31, 1
        %s481 = sand.u32 %s44, 1
        %s482 = scalar_lea.sflag [#allocation3], %s481
        %s483 = sand.u32 %s44, 1
        %s484 = smul.addr %s483, 8
        %s485 = scalar_lea.vmem [#allocation2], %s484
        // Predicated region
        $region69: #{tpu_custom_call.1} parent=67 // pred_check
          %p486 = pneg %p57
        $region70: #{tpu_custom_call.1} parent=67 // pred_check_branch
          %488 = sbr.rel (%p486) target = $region72
        $region71: #{tpu_custom_call.1} parent=67 // pred_region
          %489 = dma.done %s482, 128
        $region72: #{tpu_custom_call.1} parent=67 // pred_fallthru
          _
        %s490 = sand.u32 %s36, 1
        %s491 = scalar_lea.sflag [#allocation6], %s490
        %s492 = sand.u32 %s70, 1
        %s493 = smul.addr %s492, 8
        %s494 = scalar_lea.vmem [#allocation5], %s493
        // Predicated region
        $region73: #{tpu_custom_call.1} parent=67 // pred_check
          %p495 = pneg %p83
        $region74: #{tpu_custom_call.1} parent=67 // pred_check_branch
          %497 = sbr.rel (%p495) target = $region76
        $region75: #{tpu_custom_call.1} parent=67 // pred_region
          %498 = dma.done %s491, 128
        $region76: #{tpu_custom_call.1} parent=67 // pred_fallthru
          _
        %s499 = sand.u32 %s36, 1
        %s500 = scalar_lea.sflag [#allocation6], %s499
        %s501 = sand.u32 %s96, 1
        %s502 = smul.addr %s501, 8
        %s503 = scalar_lea.vmem [#allocation7], %s502
        // Predicated region
        $region77: #{tpu_custom_call.1} parent=67 // pred_check
          %p504 = pneg %p109
        $region78: #{tpu_custom_call.1} parent=67 // pred_check_branch
          %506 = sbr.rel (%p504) target = $region80
        $region79: #{tpu_custom_call.1} parent=67 // pred_region
          %507 = dma.done %s500, 128
        $region80: #{tpu_custom_call.1} parent=67 // pred_fallthru
          _
        %s508 = sand.u32 %s36, 1
        %s509 = scalar_lea.sflag [#allocation9], %s508
        %s510 = sand.u32 %s122, 1
        %s511 = smul.addr %s510, 8
        %s512 = scalar_lea.vmem [#allocation8], %s511
        // Predicated region
        $region81: #{tpu_custom_call.1} parent=67 // pred_check
          %p513 = pneg %p135
        $region82: #{tpu_custom_call.1} parent=67 // pred_check_branch
          %515 = sbr.rel (%p513) target = $region84
        $region83: #{tpu_custom_call.1} parent=67 // pred_region
          %516 = dma.done %s509, 128
        $region84: #{tpu_custom_call.1} parent=67 // pred_fallthru
          _
        // Predicated region
        $region85: #{tpu_custom_call.1} parent=67 // pred_check
          %p517 = pneg %p156
        $region86: #{tpu_custom_call.1} parent=67 // pred_check_branch
          %519 = sbr.rel (%p517) target = $region88
        $region87: #{tpu_custom_call.1} parent=67 // pred_region
          %520 = dma.done [#allocation9], 512
        $region88: #{tpu_custom_call.1} parent=67 // pred_fallthru
          _
        // Predicated region
        $region89: #{tpu_custom_call.1} parent=67 // pred_check
          %p521 = pneg %p198
        $region90: #{tpu_custom_call.1} parent=67 // pred_check_branch
          %523 = sbr.rel (%p521) target = $region92
        $region91: #{tpu_custom_call.1} parent=67 // pred_region
          %524 = dma.done [#allocation12], 512
        $region92: #{tpu_custom_call.1} parent=67 // pred_fallthru
          _
        // Predicated region
        $region93: #{tpu_custom_call.1} parent=67 // pred_check
          %p525 = pneg %p240
        $region94: #{tpu_custom_call.1} parent=67 // pred_check_branch
          %527 = sbr.rel (%p525) target = $region96
        $region95: #{tpu_custom_call.1} parent=67 // pred_region
          %528 = dma.done [#allocation12], 512
        $region96: #{tpu_custom_call.1} parent=67 // pred_fallthru
          _
        %s529 = sand.u32 %s44, 1
        %s530 = scalar_lea.sflag [#allocation3], %s529
        %s531 = sand.u32 %s44, 1
        %s532 = smul.addr %s531, 8
        %s533 = scalar_lea.vmem [#allocation2], %s532
        %p534 = pneg %p57
        %p535 = pneg %p54
        %s536 = sand.u32 %s36, 1
        %s537 = scalar_lea.sflag [#allocation6], %s536
        %s538 = sand.u32 %s70, 1
        %s539 = smul.addr %s538, 8
        %s540 = scalar_lea.vmem [#allocation5], %s539
        %p541 = pneg %p83
        %p542 = pneg %p80
        %s543 = sand.u32 %s36, 1
        %s544 = scalar_lea.sflag [#allocation6], %s543
        %s545 = sand.u32 %s96, 1
        %s546 = smul.addr %s545, 8
        %s547 = scalar_lea.vmem [#allocation7], %s546
        %p548 = pneg %p109
        %p549 = pneg %p106
        %s550 = sand.u32 %s36, 1
        %s551 = scalar_lea.sflag [#allocation9], %s550
        %s552 = sand.u32 %s122, 1
        %s553 = smul.addr %s552, 8
        %s554 = scalar_lea.vmem [#allocation8], %s553
        %p555 = pneg %p135
        %p556 = pneg %p132
        %p557 = pneg %p156
        %p558 = pneg %p153
        %p559 = pneg %p177
        %p560 = pneg %p174
        %p561 = pneg %p198
        %p562 = pneg %p195
        %p563 = pneg %p219
        %p564 = pneg %p216
        %p565 = pneg %p240
        %p566 = pneg %p237
        %p567 = pneg %p261
        %p568 = pneg %p258
        %p569 = pneg %p282
        %p570 = pneg %p279
        %p571 = pneg %p303
        %p572 = pneg %p300
        %p573 = pneg %p329
        %p574 = pneg %p326
        %s575 = sand.u32 %s316, 1
        %s576 = scalar_lea.sflag [#allocation4], %s575
        %s577 = sand.u32 %s316, 1
        %s578 = smul.addr %s577, 8
        %s579 = scalar_lea.vmem [#allocation14], %s578
        %v580 = vld [vmem:[%s485] sm:$0xff]
        %v581 = vld [vmem:[%s494] sm:$0xff]
        %v582 = vld [vmem:[%s503] sm:$0xff]
        %v583 = vld [vmem:[#allocation10] sm:$0xff]
        %v584 = vld [vmem:[#allocation10 + $0x8] sm:$0xff]
        %v585 = vld [vmem:[#allocation10 + $0x10] sm:$0xff]
        %v586 = vld [vmem:[#allocation10 + $0x18] sm:$0xff]
        %v587 = vld [vmem:[%s5] sm:$0x1]
        %v589 = vlaneseq
        %v590 = vshrl.u32 %v589, 7
        %v591 = vsub.s32 0, %v590
        %v592 = vrot.slane %v587, %v591
        %vm594 = vcmask 261120
        %v596 = vsel %vm594, %v580, 0
        %598 = vmatprep.subr.mxu0 0.0
        %599 = vmatpush1.msra.mxu0 %v583
        %600 = vmatprep.subr.mxu0 0.0
        %601 = vmatpush1.msra.mxu0 %v584
        %602 = vmatprep.subr.mxu0 0.0
        %603 = vmatpush1.msra.mxu0 %v585
        %604 = vmatprep.subr.mxu0 0.0
        %605 = vmatpush1.msra.mxu0 %v586
        %606 = vmatprep.subr.mxu0 0.0
        %607 = vmatpush1.msra.mxu0 0.0
        %608 = vmatprep.subr.mxu0 0.0
        %609 = vmatpush1.msra.mxu0 0.0
        %610 = vmatprep.subr.mxu0 0.0
        %611 = vmatpush1.msra.mxu0 0.0
        %612 = vmatprep.subr.mxu0 0.0
        %613 = vmatpush1.msra.mxu0 0.0
        %614 = vmatprep.subr.mxu0 0.0
        %615 = vmatpush1.msra.mxu0 0.0
        %616 = vmatprep.subr.mxu0 0.0
        %617 = vmatpush1.msra.mxu0 0.0
        %618 = vmatprep.subr.mxu0 0.0
        %619 = vmatpush1.msra.mxu0 0.0
        %620 = vmatprep.subr.mxu0 0.0
        %621 = vmatpush1.msra.mxu0 0.0
        %622 = vmatprep.subr.mxu0 0.0
        %623 = vmatpush1.msra.mxu0 0.0
        %624 = vmatprep.subr.mxu0 0.0
        %625 = vmatpush1.msra.mxu0 0.0
        %626 = vmatprep.subr.mxu0 0.0
        %627 = vmatpush1.msra.mxu0 0.0
        %628 = vmatprep.subr.mxu0 0.0
        %629 = vmatpush1.msra.mxu0 0.0
        %630 = vmatprep.subr.mxu0 0.0
        %631 = vmatpush1.msra.mxu0 0.0
        %632 = vmatprep.subr.mxu0 0.0
        %633 = vmatpush1.msra.mxu0 0.0
        %634 = vmatprep.subr.mxu0 0.0
        %635 = vmatpush1.msra.mxu0 0.0
        %636 = vmatprep.subr.mxu0 0.0
        %637 = vmatpush1.msra.mxu0 0.0
        %638 = vmatprep.subr.mxu0 0.0
        %639 = vmatpush1.msra.mxu0 0.0
        %640 = vmatprep.subr.mxu0 0.0
        %641 = vmatpush1.msra.mxu0 0.0
        %642 = vmatprep.subr.mxu0 0.0
        %643 = vmatpush1.msra.mxu0 0.0
        %644 = vmatprep.subr.mxu0 0.0
        %645 = vmatpush1.msra.mxu0 0.0
        %646 = vmatprep.subr.mxu0 0.0
        %647 = vmatpush1.msra.mxu0 0.0
        %648 = vmatprep.subr.mxu0 0.0
        %649 = vmatpush1.msra.mxu0 0.0
        %650 = vmatprep.subr.mxu0 0.0
        %651 = vmatpush1.msra.mxu0 0.0
        %652 = vmatprep.subr.mxu0 0.0
        %653 = vmatpush1.msra.mxu0 0.0
        %654 = vmatprep.subr.mxu0 0.0
        %655 = vmatpush1.msra.mxu0 0.0
        %656 = vmatprep.subr.mxu0 0.0
        %657 = vmatpush1.msra.mxu0 0.0
        %658 = vmatprep.subr.mxu0 0.0
        %659 = vmatpush1.msra.mxu0 0.0
        %660 = vmatprep.subr.mxu0 0.0
        %661 = vmatpush1.msra.mxu0 0.0
        %662 = vmatprep.mubr.f32.mxu0 0.0
        %663 = vmatmul.mubr.f32.gmra.mrb[0].mxu0 %v596
        %v664 = vpop.f32.mrb[0].mxu0
        %v665 = vadd.f32 %v592, %v664
        %v666 = vpop.f32.mrb[0].mxu0
        %667 = vdwg.mxu0
        %v668 = vld [vmem:[#allocation11] sm:$0xff]
        %v669 = vld [vmem:[#allocation11 + $0x8] sm:$0xff]
        %v670 = vld [vmem:[#allocation11 + $0x10] sm:$0xff]
        %v671 = vld [vmem:[#allocation11 + $0x18] sm:$0xff]
        %v672 = vld [vmem:[%s7] sm:$0x1]
        %v674 = vlaneseq
        %v675 = vshrl.u32 %v674, 7
        %v676 = vsub.s32 0, %v675
        %v677 = vrot.slane %v672, %v676
        %v680 = vsel %vm594, %v581, 0
        %682 = vmatprep.subr.mxu0 0.0
        %683 = vmatpush1.msra.mxu0 %v668
        %684 = vmatprep.subr.mxu0 0.0
        %685 = vmatpush1.msra.mxu0 %v669
        %686 = vmatprep.subr.mxu0 0.0
        %687 = vmatpush1.msra.mxu0 %v670
        %688 = vmatprep.subr.mxu0 0.0
        %689 = vmatpush1.msra.mxu0 %v671
        %690 = vmatprep.subr.mxu0 0.0
        %691 = vmatpush1.msra.mxu0 0.0
        %692 = vmatprep.subr.mxu0 0.0
        %693 = vmatpush1.msra.mxu0 0.0
        %694 = vmatprep.subr.mxu0 0.0
        %695 = vmatpush1.msra.mxu0 0.0
        %696 = vmatprep.subr.mxu0 0.0
        %697 = vmatpush1.msra.mxu0 0.0
        %698 = vmatprep.subr.mxu0 0.0
        %699 = vmatpush1.msra.mxu0 0.0
        %700 = vmatprep.subr.mxu0 0.0
        %701 = vmatpush1.msra.mxu0 0.0
        %702 = vmatprep.subr.mxu0 0.0
        %703 = vmatpush1.msra.mxu0 0.0
        %704 = vmatprep.subr.mxu0 0.0
        %705 = vmatpush1.msra.mxu0 0.0
        %706 = vmatprep.subr.mxu0 0.0
        %707 = vmatpush1.msra.mxu0 0.0
        %708 = vmatprep.subr.mxu0 0.0
        %709 = vmatpush1.msra.mxu0 0.0
        %710 = vmatprep.subr.mxu0 0.0
        %711 = vmatpush1.msra.mxu0 0.0
        %712 = vmatprep.subr.mxu0 0.0
        %713 = vmatpush1.msra.mxu0 0.0
        %714 = vmatprep.subr.mxu0 0.0
        %715 = vmatpush1.msra.mxu0 0.0
        %716 = vmatprep.subr.mxu0 0.0
        %717 = vmatpush1.msra.mxu0 0.0
        %718 = vmatprep.subr.mxu0 0.0
        %719 = vmatpush1.msra.mxu0 0.0
        %720 = vmatprep.subr.mxu0 0.0
        %721 = vmatpush1.msra.mxu0 0.0
        %722 = vmatprep.subr.mxu0 0.0
        %723 = vmatpush1.msra.mxu0 0.0
        %724 = vmatprep.subr.mxu0 0.0
        %725 = vmatpush1.msra.mxu0 0.0
        %726 = vmatprep.subr.mxu0 0.0
        %727 = vmatpush1.msra.mxu0 0.0
        %728 = vmatprep.subr.mxu0 0.0
        %729 = vmatpush1.msra.mxu0 0.0
        %730 = vmatprep.subr.mxu0 0.0
        %731 = vmatpush1.msra.mxu0 0.0
        %732 = vmatprep.subr.mxu0 0.0
        %733 = vmatpush1.msra.mxu0 0.0
        %734 = vmatprep.subr.mxu0 0.0
        %735 = vmatpush1.msra.mxu0 0.0
        %736 = vmatprep.subr.mxu0 0.0
        %737 = vmatpush1.msra.mxu0 0.0
        %738 = vmatprep.subr.mxu0 0.0
        %739 = vmatpush1.msra.mxu0 0.0
        %740 = vmatprep.subr.mxu0 0.0
        %741 = vmatpush1.msra.mxu0 0.0
        %742 = vmatprep.subr.mxu0 0.0
        %743 = vmatpush1.msra.mxu0 0.0
        %744 = vmatprep.subr.mxu0 0.0
        %745 = vmatpush1.msra.mxu0 0.0
        %746 = vmatprep.mubr.f32.mxu0 0.0
        %747 = vmatmul.mubr.f32.gmra.mrb[0].mxu0 %v680
        %v748 = vpop.f32.mrb[0].mxu0
        %v749 = vadd.f32 %v677, %v748
        %v750 = vpop.f32.mrb[0].mxu0
        %751 = vdwg.mxu0
        %v752 = vld [vmem:[#allocation13] sm:$0xff]
        %v753 = vld [vmem:[#allocation13 + $0x8] sm:$0xff]
        %v754 = vld [vmem:[#allocation13 + $0x10] sm:$0xff]
        %v755 = vld [vmem:[#allocation13 + $0x18] sm:$0xff]
        %v756 = vld [vmem:[%s9] sm:$0x1]
        %v758 = vlaneseq
        %v759 = vshrl.u32 %v758, 7
        %v760 = vsub.s32 0, %v759
        %v761 = vrot.slane %v756, %v760
        %v764 = vsel %vm594, %v582, 0
        %766 = vmatprep.subr.mxu0 0.0
        %767 = vmatpush1.msra.mxu0 %v752
        %768 = vmatprep.subr.mxu0 0.0
        %769 = vmatpush1.msra.mxu0 %v753
        %770 = vmatprep.subr.mxu0 0.0
        %771 = vmatpush1.msra.mxu0 %v754
        %772 = vmatprep.subr.mxu0 0.0
        %773 = vmatpush1.msra.mxu0 %v755
        %774 = vmatprep.subr.mxu0 0.0
        %775 = vmatpush1.msra.mxu0 0.0
        %776 = vmatprep.subr.mxu0 0.0
        %777 = vmatpush1.msra.mxu0 0.0
        %778 = vmatprep.subr.mxu0 0.0
        %779 = vmatpush1.msra.mxu0 0.0
        %780 = vmatprep.subr.mxu0 0.0
        %781 = vmatpush1.msra.mxu0 0.0
        %782 = vmatprep.subr.mxu0 0.0
        %783 = vmatpush1.msra.mxu0 0.0
        %784 = vmatprep.subr.mxu0 0.0
        %785 = vmatpush1.msra.mxu0 0.0
        %786 = vmatprep.subr.mxu0 0.0
        %787 = vmatpush1.msra.mxu0 0.0
        %788 = vmatprep.subr.mxu0 0.0
        %789 = vmatpush1.msra.mxu0 0.0
        %790 = vmatprep.subr.mxu0 0.0
        %791 = vmatpush1.msra.mxu0 0.0
        %792 = vmatprep.subr.mxu0 0.0
        %793 = vmatpush1.msra.mxu0 0.0
        %794 = vmatprep.subr.mxu0 0.0
        %795 = vmatpush1.msra.mxu0 0.0
        %796 = vmatprep.subr.mxu0 0.0
        %797 = vmatpush1.msra.mxu0 0.0
        %798 = vmatprep.subr.mxu0 0.0
        %799 = vmatpush1.msra.mxu0 0.0
        %800 = vmatprep.subr.mxu0 0.0
        %801 = vmatpush1.msra.mxu0 0.0
        %802 = vmatprep.subr.mxu0 0.0
        %803 = vmatpush1.msra.mxu0 0.0
        %804 = vmatprep.subr.mxu0 0.0
        %805 = vmatpush1.msra.mxu0 0.0
        %806 = vmatprep.subr.mxu0 0.0
        %807 = vmatpush1.msra.mxu0 0.0
        %808 = vmatprep.subr.mxu0 0.0
        %809 = vmatpush1.msra.mxu0 0.0
        %810 = vmatprep.subr.mxu0 0.0
        %811 = vmatpush1.msra.mxu0 0.0
        %812 = vmatprep.subr.mxu0 0.0
        %813 = vmatpush1.msra.mxu0 0.0
        %814 = vmatprep.subr.mxu0 0.0
        %815 = vmatpush1.msra.mxu0 0.0
        %816 = vmatprep.subr.mxu0 0.0
        %817 = vmatpush1.msra.mxu0 0.0
        %818 = vmatprep.subr.mxu0 0.0
        %819 = vmatpush1.msra.mxu0 0.0
        %820 = vmatprep.subr.mxu0 0.0
        %821 = vmatpush1.msra.mxu0 0.0
        %822 = vmatprep.subr.mxu0 0.0
        %823 = vmatpush1.msra.mxu0 0.0
        %824 = vmatprep.subr.mxu0 0.0
        %825 = vmatpush1.msra.mxu0 0.0
        %826 = vmatprep.subr.mxu0 0.0
        %827 = vmatpush1.msra.mxu0 0.0
        %828 = vmatprep.subr.mxu0 0.0
        %829 = vmatpush1.msra.mxu0 0.0
        %830 = vmatprep.mubr.f32.mxu0 0.0
        %831 = vmatmul.mubr.f32.gmra.mrb[0].mxu0 %v764
        %v832 = vpop.f32.mrb[0].mxu0
        %v833 = vadd.f32 %v761, %v832
        %v834 = vpop.f32.mrb[0].mxu0
        %835 = vdwg.mxu0
        %v836 = vld [vmem:[%s512] sm:$0xff]
        %vm837 = vcmask 64512
        %v839 = vsel %vm837, %v665, 0
        %v842 = vsel %vm837, %v749, 0
        %844 = vmatprep.subr.mxu0 0.0
        %845 = vmatpush1.xpose.msra.mxu0 %v842
        %846 = vmatprep.subr.mxu0 0.0
        %847 = vmatpush1.xpose.msra.mxu0 0.0
        %848 = vmatprep.subr.mxu0 0.0
        %849 = vmatpush1.xpose.msra.mxu0 0.0
        %850 = vmatprep.subr.mxu0 0.0
        %851 = vmatpush1.xpose.msra.mxu0 0.0
        %852 = vmatprep.subr.mxu0 0.0
        %853 = vmatpush1.xpose.msra.mxu0 0.0
        %854 = vmatprep.subr.mxu0 0.0
        %855 = vmatpush1.xpose.msra.mxu0 0.0
        %856 = vmatprep.subr.mxu0 0.0
        %857 = vmatpush1.xpose.msra.mxu0 0.0
        %858 = vmatprep.subr.mxu0 0.0
        %859 = vmatpush1.xpose.msra.mxu0 0.0
        %860 = vmatprep.subr.mxu0 0.0
        %861 = vmatpush1.xpose.msra.mxu0 0.0
        %862 = vmatprep.subr.mxu0 0.0
        %863 = vmatpush1.xpose.msra.mxu0 0.0
        %864 = vmatprep.subr.mxu0 0.0
        %865 = vmatpush1.xpose.msra.mxu0 0.0
        %866 = vmatprep.subr.mxu0 0.0
        %867 = vmatpush1.xpose.msra.mxu0 0.0
        %868 = vmatprep.subr.mxu0 0.0
        %869 = vmatpush1.xpose.msra.mxu0 0.0
        %870 = vmatprep.subr.mxu0 0.0
        %871 = vmatpush1.xpose.msra.mxu0 0.0
        %872 = vmatprep.subr.mxu0 0.0
        %873 = vmatpush1.xpose.msra.mxu0 0.0
        %874 = vmatprep.subr.mxu0 0.0
        %875 = vmatpush1.xpose.msra.mxu0 0.0
        %876 = vmatprep.subr.mxu0 0.0
        %877 = vmatpush1.xpose.msra.mxu0 0.0
        %878 = vmatprep.subr.mxu0 0.0
        %879 = vmatpush1.xpose.msra.mxu0 0.0
        %880 = vmatprep.subr.mxu0 0.0
        %881 = vmatpush1.xpose.msra.mxu0 0.0
        %882 = vmatprep.subr.mxu0 0.0
        %883 = vmatpush1.xpose.msra.mxu0 0.0
        %884 = vmatprep.subr.mxu0 0.0
        %885 = vmatpush1.xpose.msra.mxu0 0.0
        %886 = vmatprep.subr.mxu0 0.0
        %887 = vmatpush1.xpose.msra.mxu0 0.0
        %888 = vmatprep.subr.mxu0 0.0
        %889 = vmatpush1.xpose.msra.mxu0 0.0
        %890 = vmatprep.subr.mxu0 0.0
        %891 = vmatpush1.xpose.msra.mxu0 0.0
        %892 = vmatprep.subr.mxu0 0.0
        %893 = vmatpush1.xpose.msra.mxu0 0.0
        %894 = vmatprep.subr.mxu0 0.0
        %895 = vmatpush1.xpose.msra.mxu0 0.0
        %896 = vmatprep.subr.mxu0 0.0
        %897 = vmatpush1.xpose.msra.mxu0 0.0
        %898 = vmatprep.subr.mxu0 0.0
        %899 = vmatpush1.xpose.msra.mxu0 0.0
        %900 = vmatprep.subr.mxu0 0.0
        %901 = vmatpush1.xpose.msra.mxu0 0.0
        %902 = vmatprep.subr.mxu0 0.0
        %903 = vmatpush1.xpose.msra.mxu0 0.0
        %904 = vmatprep.subr.mxu0 0.0
        %905 = vmatpush1.xpose.msra.mxu0 0.0
        %906 = vmatprep.subr.mxu0 0.0
        %907 = vmatpush1.xpose.msra.mxu0 0.0
        %908 = vmatprep.mubr.f32.mxu0 0.0
        %909 = vmatmul.mubr.f32.gmra.mrb[0].mxu0 %v839
        %v910 = vpop.f32.mrb[0].mxu0
        %v911 = vadd.f32 0.0, %v910
        %v912 = vpop.f32.mrb[0].mxu0
        %913 = vdwg.mxu0
        %v914 = vmul.f32 %v911, 0.35355338
        %v915 = vadd.f32 %v914, %v836
        %v916 = vsel %vm837, %v915, -inf
        %917 = vmax.xlane.f32.xlu0 %v916
        %v918 = vpop.xlane.xlu0 %917
        %v919 = vsub.f32 %v915, %v918
        %v920 = vmul.f32 %v919, 1.442695
        %v921 = vpow.pop %v920
        %v922 = vsel %vm837, %v921, 0.0
        %923 = vadd.xlane.f32.xlu0 %v922
        %v924 = vpop.xlane.xlu0 %923
        %v925 = vrcp.pop %v924
        %v926 = vmul.f32 %v921, %v925
        %v928 = vsel %vm837, %v926, 0
        %930 = vmatprep.subr.mxu0 0.0
        %931 = vmatpush1.msra.mxu0 %v833
        %932 = vmatprep.subr.mxu0 0.0
        %933 = vmatpush1.msra.mxu0 0.0
        %934 = vmatprep.subr.mxu0 0.0
        %935 = vmatpush1.msra.mxu0 0.0
        %936 = vmatprep.subr.mxu0 0.0
        %937 = vmatpush1.msra.mxu0 0.0
        %938 = vmatprep.subr.mxu0 0.0
        %939 = vmatpush1.msra.mxu0 0.0
        %940 = vmatprep.subr.mxu0 0.0
        %941 = vmatpush1.msra.mxu0 0.0
        %942 = vmatprep.subr.mxu0 0.0
        %943 = vmatpush1.msra.mxu0 0.0
        %944 = vmatprep.subr.mxu0 0.0
        %945 = vmatpush1.msra.mxu0 0.0
        %946 = vmatprep.subr.mxu0 0.0
        %947 = vmatpush1.msra.mxu0 0.0
        %948 = vmatprep.subr.mxu0 0.0
        %949 = vmatpush1.msra.mxu0 0.0
        %950 = vmatprep.subr.mxu0 0.0
        %951 = vmatpush1.msra.mxu0 0.0
        %952 = vmatprep.subr.mxu0 0.0
        %953 = vmatpush1.msra.mxu0 0.0
        %954 = vmatprep.subr.mxu0 0.0
        %955 = vmatpush1.msra.mxu0 0.0
        %956 = vmatprep.subr.mxu0 0.0
        %957 = vmatpush1.msra.mxu0 0.0
        %958 = vmatprep.subr.mxu0 0.0
        %959 = vmatpush1.msra.mxu0 0.0
        %960 = vmatprep.subr.mxu0 0.0
        %961 = vmatpush1.msra.mxu0 0.0
        %962 = vmatprep.subr.mxu0 0.0
        %963 = vmatpush1.msra.mxu0 0.0
        %964 = vmatprep.subr.mxu0 0.0
        %965 = vmatpush1.msra.mxu0 0.0
        %966 = vmatprep.subr.mxu0 0.0
        %967 = vmatpush1.msra.mxu0 0.0
        %968 = vmatprep.subr.mxu0 0.0
        %969 = vmatpush1.msra.mxu0 0.0
        %970 = vmatprep.subr.mxu0 0.0
        %971 = vmatpush1.msra.mxu0 0.0
        %972 = vmatprep.subr.mxu0 0.0
        %973 = vmatpush1.msra.mxu0 0.0
        %974 = vmatprep.subr.mxu0 0.0
        %975 = vmatpush1.msra.mxu0 0.0
        %976 = vmatprep.subr.mxu0 0.0
        %977 = vmatpush1.msra.mxu0 0.0
        %978 = vmatprep.subr.mxu0 0.0
        %979 = vmatpush1.msra.mxu0 0.0
        %980 = vmatprep.subr.mxu0 0.0
        %981 = vmatpush1.msra.mxu0 0.0
        %982 = vmatprep.subr.mxu0 0.0
        %983 = vmatpush1.msra.mxu0 0.0
        %984 = vmatprep.subr.mxu0 0.0
        %985 = vmatpush1.msra.mxu0 0.0
        %986 = vmatprep.subr.mxu0 0.0
        %987 = vmatpush1.msra.mxu0 0.0
        %988 = vmatprep.subr.mxu0 0.0
        %989 = vmatpush1.msra.mxu0 0.0
        %990 = vmatprep.subr.mxu0 0.0
        %991 = vmatpush1.msra.mxu0 0.0
        %992 = vmatprep.subr.mxu0 0.0
        %993 = vmatpush1.msra.mxu0 0.0
        %994 = vmatprep.mubr.f32.mxu0 0.0
        %995 = vmatmul.mubr.f32.gmra.mrb[0].mxu0 %v928
        %v996 = vpop.f32.mrb[0].mxu0
        %v997 = vadd.f32 0.0, %v996
        %v998 = vpop.f32.mrb[0].mxu0
        %999 = vdwg.mxu0
        %v1000 = vld [vmem:[%s10] sm:$0xff]
        %1001 = vrot.lane.b32.xlu0 %v665, 120
        %v1002 = vpop.permute.xlu0 %1001
        %1003 = vrot.lane.b32.xlu0 %v749, 120
        %v1004 = vpop.permute.xlu0 %1003
        %v1005 = vsel %vm837, %v1002, 0
        %v1007 = vsel %vm837, %v1004, 0
        %1009 = vmatprep.subr.mxu0 0.0
        %1010 = vmatpush1.xpose.msra.mxu0 %v1007
        %1011 = vmatprep.subr.mxu0 0.0
        %1012 = vmatpush1.xpose.msra.mxu0 0.0
        %1013 = vmatprep.subr.mxu0 0.0
        %1014 = vmatpush1.xpose.msra.mxu0 0.0
        %1015 = vmatprep.subr.mxu0 0.0
        %1016 = vmatpush1.xpose.msra.mxu0 0.0
        %1017 = vmatprep.subr.mxu0 0.0
        %1018 = vmatpush1.xpose.msra.mxu0 0.0
        %1019 = vmatprep.subr.mxu0 0.0
        %1020 = vmatpush1.xpose.msra.mxu0 0.0
        %1021 = vmatprep.subr.mxu0 0.0
        %1022 = vmatpush1.xpose.msra.mxu0 0.0
        %1023 = vmatprep.subr.mxu0 0.0
        %1024 = vmatpush1.xpose.msra.mxu0 0.0
        %1025 = vmatprep.subr.mxu0 0.0
        %1026 = vmatpush1.xpose.msra.mxu0 0.0
        %1027 = vmatprep.subr.mxu0 0.0
        %1028 = vmatpush1.xpose.msra.mxu0 0.0
        %1029 = vmatprep.subr.mxu0 0.0
        %1030 = vmatpush1.xpose.msra.mxu0 0.0
        %1031 = vmatprep.subr.mxu0 0.0
        %1032 = vmatpush1.xpose.msra.mxu0 0.0
        %1033 = vmatprep.subr.mxu0 0.0
        %1034 = vmatpush1.xpose.msra.mxu0 0.0
        %1035 = vmatprep.subr.mxu0 0.0
        %1036 = vmatpush1.xpose.msra.mxu0 0.0
        %1037 = vmatprep.subr.mxu0 0.0
        %1038 = vmatpush1.xpose.msra.mxu0 0.0
        %1039 = vmatprep.subr.mxu0 0.0
        %1040 = vmatpush1.xpose.msra.mxu0 0.0
        %1041 = vmatprep.subr.mxu0 0.0
        %1042 = vmatpush1.xpose.msra.mxu0 0.0
        %1043 = vmatprep.subr.mxu0 0.0
        %1044 = vmatpush1.xpose.msra.mxu0 0.0
        %1045 = vmatprep.subr.mxu0 0.0
        %1046 = vmatpush1.xpose.msra.mxu0 0.0
        %1047 = vmatprep.subr.mxu0 0.0
        %1048 = vmatpush1.xpose.msra.mxu0 0.0
        %1049 = vmatprep.subr.mxu0 0.0
        %1050 = vmatpush1.xpose.msra.mxu0 0.0
        %1051 = vmatprep.subr.mxu0 0.0
        %1052 = vmatpush1.xpose.msra.mxu0 0.0
        %1053 = vmatprep.subr.mxu0 0.0
        %1054 = vmatpush1.xpose.msra.mxu0 0.0
        %1055 = vmatprep.subr.mxu0 0.0
        %1056 = vmatpush1.xpose.msra.mxu0 0.0
        %1057 = vmatprep.subr.mxu0 0.0
        %1058 = vmatpush1.xpose.msra.mxu0 0.0
        %1059 = vmatprep.subr.mxu0 0.0
        %1060 = vmatpush1.xpose.msra.mxu0 0.0
        %1061 = vmatprep.subr.mxu0 0.0
        %1062 = vmatpush1.xpose.msra.mxu0 0.0
        %1063 = vmatprep.subr.mxu0 0.0
        %1064 = vmatpush1.xpose.msra.mxu0 0.0
        %1065 = vmatprep.subr.mxu0 0.0
        %1066 = vmatpush1.xpose.msra.mxu0 0.0
        %1067 = vmatprep.subr.mxu0 0.0
        %1068 = vmatpush1.xpose.msra.mxu0 0.0
        %1069 = vmatprep.subr.mxu0 0.0
        %1070 = vmatpush1.xpose.msra.mxu0 0.0
        %1071 = vmatprep.subr.mxu0 0.0
        %1072 = vmatpush1.xpose.msra.mxu0 0.0
        %1073 = vmatprep.mubr.f32.mxu0 0.0
        %1074 = vmatmul.mubr.f32.gmra.mrb[0].mxu0 %v1005
        %v1075 = vpop.f32.mrb[0].mxu0
        %v1076 = vadd.f32 0.0, %v1075
        %v1077 = vpop.f32.mrb[0].mxu0
        %1078 = vdwg.mxu0
        %v1079 = vmul.f32 %v1076, 0.35355338
        %v1080 = vadd.f32 %v1079, %v836
        %v1081 = vsel %vm837, %v1080, -inf
        %1082 = vmax.xlane.f32.xlu0 %v1081
        %v1083 = vpop.xlane.xlu0 %1082
        %v1084 = vsub.f32 %v1080, %v1083
        %v1085 = vmul.f32 %v1084, 1.442695
        %v1086 = vpow.pop %v1085
        %v1087 = vsel %vm837, %v1086, 0.0
        %1088 = vadd.xlane.f32.xlu0 %v1087
        %v1089 = vpop.xlane.xlu0 %1088
        %v1090 = vrcp.pop %v1089
        %v1091 = vmul.f32 %v1086, %v1090
        %1093 = vrot.lane.b32.xlu0 %v833, 120
        %v1094 = vpop.permute.xlu0 %1093
        %v1097 = vsel %vm837, %v1091, 0
        %1099 = vmatprep.subr.mxu0 0.0
        %1100 = vmatpush1.msra.mxu0 %v1094
        %1101 = vmatprep.subr.mxu0 0.0
        %1102 = vmatpush1.msra.mxu0 0.0
        %1103 = vmatprep.subr.mxu0 0.0
        %1104 = vmatpush1.msra.mxu0 0.0
        %1105 = vmatprep.subr.mxu0 0.0
        %1106 = vmatpush1.msra.mxu0 0.0
        %1107 = vmatprep.subr.mxu0 0.0
        %1108 = vmatpush1.msra.mxu0 0.0
        %1109 = vmatprep.subr.mxu0 0.0
        %1110 = vmatpush1.msra.mxu0 0.0
        %1111 = vmatprep.subr.mxu0 0.0
        %1112 = vmatpush1.msra.mxu0 0.0
        %1113 = vmatprep.subr.mxu0 0.0
        %1114 = vmatpush1.msra.mxu0 0.0
        %1115 = vmatprep.subr.mxu0 0.0
        %1116 = vmatpush1.msra.mxu0 0.0
        %1117 = vmatprep.subr.mxu0 0.0
        %1118 = vmatpush1.msra.mxu0 0.0
        %1119 = vmatprep.subr.mxu0 0.0
        %1120 = vmatpush1.msra.mxu0 0.0
        %1121 = vmatprep.subr.mxu0 0.0
        %1122 = vmatpush1.msra.mxu0 0.0
        %1123 = vmatprep.subr.mxu0 0.0
        %1124 = vmatpush1.msra.mxu0 0.0
        %1125 = vmatprep.subr.mxu0 0.0
        %1126 = vmatpush1.msra.mxu0 0.0
        %1127 = vmatprep.subr.mxu0 0.0
        %1128 = vmatpush1.msra.mxu0 0.0
        %1129 = vmatprep.subr.mxu0 0.0
        %1130 = vmatpush1.msra.mxu0 0.0
        %1131 = vmatprep.subr.mxu0 0.0
        %1132 = vmatpush1.msra.mxu0 0.0
        %1133 = vmatprep.subr.mxu0 0.0
        %1134 = vmatpush1.msra.mxu0 0.0
        %1135 = vmatprep.subr.mxu0 0.0
        %1136 = vmatpush1.msra.mxu0 0.0
        %1137 = vmatprep.subr.mxu0 0.0
        %1138 = vmatpush1.msra.mxu0 0.0
        %1139 = vmatprep.subr.mxu0 0.0
        %1140 = vmatpush1.msra.mxu0 0.0
        %1141 = vmatprep.subr.mxu0 0.0
        %1142 = vmatpush1.msra.mxu0 0.0
        %1143 = vmatprep.subr.mxu0 0.0
        %1144 = vmatpush1.msra.mxu0 0.0
        %1145 = vmatprep.subr.mxu0 0.0
        %1146 = vmatpush1.msra.mxu0 0.0
        %1147 = vmatprep.subr.mxu0 0.0
        %1148 = vmatpush1.msra.mxu0 0.0
        %1149 = vmatprep.subr.mxu0 0.0
        %1150 = vmatpush1.msra.mxu0 0.0
        %1151 = vmatprep.subr.mxu0 0.0
        %1152 = vmatpush1.msra.mxu0 0.0
        %1153 = vmatprep.subr.mxu0 0.0
        %1154 = vmatpush1.msra.mxu0 0.0
        %1155 = vmatprep.subr.mxu0 0.0
        %1156 = vmatpush1.msra.mxu0 0.0
        %1157 = vmatprep.subr.mxu0 0.0
        %1158 = vmatpush1.msra.mxu0 0.0
        %1159 = vmatprep.subr.mxu0 0.0
        %1160 = vmatpush1.msra.mxu0 0.0
        %1161 = vmatprep.subr.mxu0 0.0
        %1162 = vmatpush1.msra.mxu0 0.0
        %1163 = vmatprep.mubr.f32.mxu0 0.0
        %1164 = vmatmul.mubr.f32.gmra.mrb[0].mxu0 %v1097
        %v1165 = vpop.f32.mrb[0].mxu0
        %v1166 = vadd.f32 0.0, %v1165
        %v1167 = vpop.f32.mrb[0].mxu0
        %1168 = vdwg.mxu0
        %v1169 = vld [vmem:[%s10 + $0x8] sm:$0xff]
        %v1171 = vsel %vm837, %v1166, 0
        %1173 = vmatprep.subr.mxu0 0.0
        %1174 = vmatpush1.msra.mxu0 %v1169
        %1175 = vmatprep.subr.mxu0 0.0
        %1176 = vmatpush1.msra.mxu0 0.0
        %1177 = vmatprep.subr.mxu0 0.0
        %1178 = vmatpush1.msra.mxu0 0.0
        %1179 = vmatprep.subr.mxu0 0.0
        %1180 = vmatpush1.msra.mxu0 0.0
        %1181 = vmatprep.subr.mxu0 0.0
        %1182 = vmatpush1.msra.mxu0 0.0
        %1183 = vmatprep.subr.mxu0 0.0
        %1184 = vmatpush1.msra.mxu0 0.0
        %1185 = vmatprep.subr.mxu0 0.0
        %1186 = vmatpush1.msra.mxu0 0.0
        %1187 = vmatprep.subr.mxu0 0.0
        %1188 = vmatpush1.msra.mxu0 0.0
        %1189 = vmatprep.subr.mxu0 0.0
        %1190 = vmatpush1.msra.mxu0 0.0
        %1191 = vmatprep.subr.mxu0 0.0
        %1192 = vmatpush1.msra.mxu0 0.0
        %1193 = vmatprep.subr.mxu0 0.0
        %1194 = vmatpush1.msra.mxu0 0.0
        %1195 = vmatprep.subr.mxu0 0.0
        %1196 = vmatpush1.msra.mxu0 0.0
        %1197 = vmatprep.subr.mxu0 0.0
        %1198 = vmatpush1.msra.mxu0 0.0
        %1199 = vmatprep.subr.mxu0 0.0
        %1200 = vmatpush1.msra.mxu0 0.0
        %1201 = vmatprep.subr.mxu0 0.0
        %1202 = vmatpush1.msra.mxu0 0.0
        %1203 = vmatprep.subr.mxu0 0.0
        %1204 = vmatpush1.msra.mxu0 0.0
        %1205 = vmatprep.subr.mxu0 0.0
        %1206 = vmatpush1.msra.mxu0 0.0
        %1207 = vmatprep.subr.mxu0 0.0
        %1208 = vmatpush1.msra.mxu0 0.0
        %1209 = vmatprep.subr.mxu0 0.0
        %1210 = vmatpush1.msra.mxu0 0.0
        %1211 = vmatprep.subr.mxu0 0.0
        %1212 = vmatpush1.msra.mxu0 0.0
        %1213 = vmatprep.subr.mxu0 0.0
        %1214 = vmatpush1.msra.mxu0 0.0
        %1215 = vmatprep.subr.mxu0 0.0
        %1216 = vmatpush1.msra.mxu0 0.0
        %1217 = vmatprep.subr.mxu0 0.0
        %1218 = vmatpush1.msra.mxu0 0.0
        %1219 = vmatprep.subr.mxu0 0.0
        %1220 = vmatpush1.msra.mxu0 0.0
        %1221 = vmatprep.subr.mxu0 0.0
        %1222 = vmatpush1.msra.mxu0 0.0
        %1223 = vmatprep.subr.mxu0 0.0
        %1224 = vmatpush1.msra.mxu0 0.0
        %1225 = vmatprep.subr.mxu0 0.0
        %1226 = vmatpush1.msra.mxu0 0.0
        %1227 = vmatprep.subr.mxu0 0.0
        %1228 = vmatpush1.msra.mxu0 0.0
        %1229 = vmatprep.subr.mxu0 0.0
        %1230 = vmatpush1.msra.mxu0 0.0
        %1231 = vmatprep.subr.mxu0 0.0
        %1232 = vmatpush1.msra.mxu0 0.0
        %1233 = vmatprep.subr.mxu0 0.0
        %1234 = vmatpush1.msra.mxu0 0.0
        %1235 = vmatprep.subr.mxu0 0.0
        %1236 = vmatpush1.msra.mxu0 0.0
        %1237 = vmatprep.mubr.f32.mxu0 0.0
        %1238 = vmatmul.mubr.f32.gmra.mrb[0].mxu0 %v1171
        %v1239 = vpop.f32.mrb[0].mxu0
        %v1240 = vadd.f32 0.0, %v1239
        %v1241 = vpop.f32.mrb[0].mxu0
        %1242 = vdwg.mxu0
        %v1244 = vsel %vm837, %v997, 0
        %1246 = vmatprep.subr.mxu0 0.0
        %1247 = vmatpush1.msra.mxu0 %v1000
        %1248 = vmatprep.subr.mxu0 0.0
        %1249 = vmatpush1.msra.mxu0 0.0
        %1250 = vmatprep.subr.mxu0 0.0
        %1251 = vmatpush1.msra.mxu0 0.0
        %1252 = vmatprep.subr.mxu0 0.0
        %1253 = vmatpush1.msra.mxu0 0.0
        %1254 = vmatprep.subr.mxu0 0.0
        %1255 = vmatpush1.msra.mxu0 0.0
        %1256 = vmatprep.subr.mxu0 0.0
        %1257 = vmatpush1.msra.mxu0 0.0
        %1258 = vmatprep.subr.mxu0 0.0
        %1259 = vmatpush1.msra.mxu0 0.0
        %1260 = vmatprep.subr.mxu0 0.0
        %1261 = vmatpush1.msra.mxu0 0.0
        %1262 = vmatprep.subr.mxu0 0.0
        %1263 = vmatpush1.msra.mxu0 0.0
        %1264 = vmatprep.subr.mxu0 0.0
        %1265 = vmatpush1.msra.mxu0 0.0
        %1266 = vmatprep.subr.mxu0 0.0
        %1267 = vmatpush1.msra.mxu0 0.0
        %1268 = vmatprep.subr.mxu0 0.0
        %1269 = vmatpush1.msra.mxu0 0.0
        %1270 = vmatprep.subr.mxu0 0.0
        %1271 = vmatpush1.msra.mxu0 0.0
        %1272 = vmatprep.subr.mxu0 0.0
        %1273 = vmatpush1.msra.mxu0 0.0
        %1274 = vmatprep.subr.mxu0 0.0
        %1275 = vmatpush1.msra.mxu0 0.0
        %1276 = vmatprep.subr.mxu0 0.0
        %1277 = vmatpush1.msra.mxu0 0.0
        %1278 = vmatprep.subr.mxu0 0.0
        %1279 = vmatpush1.msra.mxu0 0.0
        %1280 = vmatprep.subr.mxu0 0.0
        %1281 = vmatpush1.msra.mxu0 0.0
        %1282 = vmatprep.subr.mxu0 0.0
        %1283 = vmatpush1.msra.mxu0 0.0
        %1284 = vmatprep.subr.mxu0 0.0
        %1285 = vmatpush1.msra.mxu0 0.0
        %1286 = vmatprep.subr.mxu0 0.0
        %1287 = vmatpush1.msra.mxu0 0.0
        %1288 = vmatprep.subr.mxu0 0.0
        %1289 = vmatpush1.msra.mxu0 0.0
        %1290 = vmatprep.subr.mxu0 0.0
        %1291 = vmatpush1.msra.mxu0 0.0
        %1292 = vmatprep.subr.mxu0 0.0
        %1293 = vmatpush1.msra.mxu0 0.0
        %1294 = vmatprep.subr.mxu0 0.0
        %1295 = vmatpush1.msra.mxu0 0.0
        %1296 = vmatprep.subr.mxu0 0.0
        %1297 = vmatpush1.msra.mxu0 0.0
        %1298 = vmatprep.subr.mxu0 0.0
        %1299 = vmatpush1.msra.mxu0 0.0
        %1300 = vmatprep.subr.mxu0 0.0
        %1301 = vmatpush1.msra.mxu0 0.0
        %1302 = vmatprep.subr.mxu0 0.0
        %1303 = vmatpush1.msra.mxu0 0.0
        %1304 = vmatprep.subr.mxu0 0.0
        %1305 = vmatpush1.msra.mxu0 0.0
        %1306 = vmatprep.subr.mxu0 0.0
        %1307 = vmatpush1.msra.mxu0 0.0
        %1308 = vmatprep.subr.mxu0 0.0
        %1309 = vmatpush1.msra.mxu0 0.0
        %1310 = vmatprep.mubr.f32.mxu0 0.0
        %1311 = vmatmul.mubr.f32.gmra.mrb[0].mxu0 %v1244
        %v1312 = vpop.f32.mrb[0].mxu0
        %v1313 = vadd.f32 %v1240, %v1312
        %v1314 = vpop.f32.mrb[0].mxu0
        %1315 = vdwg.mxu0
        %1316 = vrot.lane.b32.xlu0 %v665, 112
        %v1317 = vpop.permute.xlu0 %1316
        %1318 = vrot.lane.b32.xlu0 %v749, 112
        %v1319 = vpop.permute.xlu0 %1318
        %v1320 = vsel %vm837, %v1317, 0
        %v1322 = vsel %vm837, %v1319, 0
        %1324 = vmatprep.subr.mxu0 0.0
        %1325 = vmatpush1.xpose.msra.mxu0 %v1322
        %1326 = vmatprep.subr.mxu0 0.0
        %1327 = vmatpush1.xpose.msra.mxu0 0.0
        %1328 = vmatprep.subr.mxu0 0.0
        %1329 = vmatpush1.xpose.msra.mxu0 0.0
        %1330 = vmatprep.subr.mxu0 0.0
        %1331 = vmatpush1.xpose.msra.mxu0 0.0
        %1332 = vmatprep.subr.mxu0 0.0
        %1333 = vmatpush1.xpose.msra.mxu0 0.0
        %1334 = vmatprep.subr.mxu0 0.0
        %1335 = vmatpush1.xpose.msra.mxu0 0.0
        %1336 = vmatprep.subr.mxu0 0.0
        %1337 = vmatpush1.xpose.msra.mxu0 0.0
        %1338 = vmatprep.subr.mxu0 0.0
        %1339 = vmatpush1.xpose.msra.mxu0 0.0
        %1340 = vmatprep.subr.mxu0 0.0
        %1341 = vmatpush1.xpose.msra.mxu0 0.0
        %1342 = vmatprep.subr.mxu0 0.0
        %1343 = vmatpush1.xpose.msra.mxu0 0.0
        %1344 = vmatprep.subr.mxu0 0.0
        %1345 = vmatpush1.xpose.msra.mxu0 0.0
        %1346 = vmatprep.subr.mxu0 0.0
        %1347 = vmatpush1.xpose.msra.mxu0 0.0
        %1348 = vmatprep.subr.mxu0 0.0
        %1349 = vmatpush1.xpose.msra.mxu0 0.0
        %1350 = vmatprep.subr.mxu0 0.0
        %1351 = vmatpush1.xpose.msra.mxu0 0.0
        %1352 = vmatprep.subr.mxu0 0.0
        %1353 = vmatpush1.xpose.msra.mxu0 0.0
        %1354 = vmatprep.subr.mxu0 0.0
        %1355 = vmatpush1.xpose.msra.mxu0 0.0
        %1356 = vmatprep.subr.mxu0 0.0
        %1357 = vmatpush1.xpose.msra.mxu0 0.0
        %1358 = vmatprep.subr.mxu0 0.0
        %1359 = vmatpush1.xpose.msra.mxu0 0.0
        %1360 = vmatprep.subr.mxu0 0.0
        %1361 = vmatpush1.xpose.msra.mxu0 0.0
        %1362 = vmatprep.subr.mxu0 0.0
        %1363 = vmatpush1.xpose.msra.mxu0 0.0
        %1364 = vmatprep.subr.mxu0 0.0
        %1365 = vmatpush1.xpose.msra.mxu0 0.0
        %1366 = vmatprep.subr.mxu0 0.0
        %1367 = vmatpush1.xpose.msra.mxu0 0.0
        %1368 = vmatprep.subr.mxu0 0.0
        %1369 = vmatpush1.xpose.msra.mxu0 0.0
        %1370 = vmatprep.subr.mxu0 0.0
        %1371 = vmatpush1.xpose.msra.mxu0 0.0
        %1372 = vmatprep.subr.mxu0 0.0
        %1373 = vmatpush1.xpose.msra.mxu0 0.0
        %1374 = vmatprep.subr.mxu0 0.0
        %1375 = vmatpush1.xpose.msra.mxu0 0.0
        %1376 = vmatprep.subr.mxu0 0.0
        %1377 = vmatpush1.xpose.msra.mxu0 0.0
        %1378 = vmatprep.subr.mxu0 0.0
        %1379 = vmatpush1.xpose.msra.mxu0 0.0
        %1380 = vmatprep.subr.mxu0 0.0
        %1381 = vmatpush1.xpose.msra.mxu0 0.0
        %1382 = vmatprep.subr.mxu0 0.0
        %1383 = vmatpush1.xpose.msra.mxu0 0.0
        %1384 = vmatprep.subr.mxu0 0.0
        %1385 = vmatpush1.xpose.msra.mxu0 0.0
        %1386 = vmatprep.subr.mxu0 0.0
        %1387 = vmatpush1.xpose.msra.mxu0 0.0
        %1388 = vmatprep.mubr.f32.mxu0 0.0
        %1389 = vmatmul.mubr.f32.gmra.mrb[0].mxu0 %v1320
        %v1390 = vpop.f32.mrb[0].mxu0
        %v1391 = vadd.f32 0.0, %v1390
        %v1392 = vpop.f32.mrb[0].mxu0
        %1393 = vdwg.mxu0
        %v1394 = vmul.f32 %v1391, 0.35355338
        %v1395 = vadd.f32 %v1394, %v836
        %v1396 = vsel %vm837, %v1395, -inf
        %1397 = vmax.xlane.f32.xlu0 %v1396
        %v1398 = vpop.xlane.xlu0 %1397
        %v1399 = vsub.f32 %v1395, %v1398
        %v1400 = vmul.f32 %v1399, 1.442695
        %v1401 = vpow.pop %v1400
        %v1402 = vsel %vm837, %v1401, 0.0
        %1403 = vadd.xlane.f32.xlu0 %v1402
        %v1404 = vpop.xlane.xlu0 %1403
        %v1405 = vrcp.pop %v1404
        %v1406 = vmul.f32 %v1401, %v1405
        %1407 = vrot.lane.b32.xlu0 %v833, 112
        %v1408 = vpop.permute.xlu0 %1407
        %v1411 = vsel %vm837, %v1406, 0
        %1413 = vmatprep.subr.mxu0 0.0
        %1414 = vmatpush1.msra.mxu0 %v1408
        %1415 = vmatprep.subr.mxu0 0.0
        %1416 = vmatpush1.msra.mxu0 0.0
        %1417 = vmatprep.subr.mxu0 0.0
        %1418 = vmatpush1.msra.mxu0 0.0
        %1419 = vmatprep.subr.mxu0 0.0
        %1420 = vmatpush1.msra.mxu0 0.0
        %1421 = vmatprep.subr.mxu0 0.0
        %1422 = vmatpush1.msra.mxu0 0.0
        %1423 = vmatprep.subr.mxu0 0.0
        %1424 = vmatpush1.msra.mxu0 0.0
        %1425 = vmatprep.subr.mxu0 0.0
        %1426 = vmatpush1.msra.mxu0 0.0
        %1427 = vmatprep.subr.mxu0 0.0
        %1428 = vmatpush1.msra.mxu0 0.0
        %1429 = vmatprep.subr.mxu0 0.0
        %1430 = vmatpush1.msra.mxu0 0.0
        %1431 = vmatprep.subr.mxu0 0.0
        %1432 = vmatpush1.msra.mxu0 0.0
        %1433 = vmatprep.subr.mxu0 0.0
        %1434 = vmatpush1.msra.mxu0 0.0
        %1435 = vmatprep.subr.mxu0 0.0
        %1436 = vmatpush1.msra.mxu0 0.0
        %1437 = vmatprep.subr.mxu0 0.0
        %1438 = vmatpush1.msra.mxu0 0.0
        %1439 = vmatprep.subr.mxu0 0.0
        %1440 = vmatpush1.msra.mxu0 0.0
        %1441 = vmatprep.subr.mxu0 0.0
        %1442 = vmatpush1.msra.mxu0 0.0
        %1443 = vmatprep.subr.mxu0 0.0
        %1444 = vmatpush1.msra.mxu0 0.0
        %1445 = vmatprep.subr.mxu0 0.0
        %1446 = vmatpush1.msra.mxu0 0.0
        %1447 = vmatprep.subr.mxu0 0.0
        %1448 = vmatpush1.msra.mxu0 0.0
        %1449 = vmatprep.subr.mxu0 0.0
        %1450 = vmatpush1.msra.mxu0 0.0
        %1451 = vmatprep.subr.mxu0 0.0
        %1452 = vmatpush1.msra.mxu0 0.0
        %1453 = vmatprep.subr.mxu0 0.0
        %1454 = vmatpush1.msra.mxu0 0.0
        %1455 = vmatprep.subr.mxu0 0.0
        %1456 = vmatpush1.msra.mxu0 0.0
        %1457 = vmatprep.subr.mxu0 0.0
        %1458 = vmatpush1.msra.mxu0 0.0
        %1459 = vmatprep.subr.mxu0 0.0
        %1460 = vmatpush1.msra.mxu0 0.0
        %1461 = vmatprep.subr.mxu0 0.0
        %1462 = vmatpush1.msra.mxu0 0.0
        %1463 = vmatprep.subr.mxu0 0.0
        %1464 = vmatpush1.msra.mxu0 0.0
        %1465 = vmatprep.subr.mxu0 0.0
        %1466 = vmatpush1.msra.mxu0 0.0
        %1467 = vmatprep.subr.mxu0 0.0
        %1468 = vmatpush1.msra.mxu0 0.0
        %1469 = vmatprep.subr.mxu0 0.0
        %1470 = vmatpush1.msra.mxu0 0.0
        %1471 = vmatprep.subr.mxu0 0.0
        %1472 = vmatpush1.msra.mxu0 0.0
        %1473 = vmatprep.subr.mxu0 0.0
        %1474 = vmatpush1.msra.mxu0 0.0
        %1475 = vmatprep.subr.mxu0 0.0
        %1476 = vmatpush1.msra.mxu0 0.0
        %1477 = vmatprep.mubr.f32.mxu0 0.0
        %1478 = vmatmul.mubr.f32.gmra.mrb[0].mxu0 %v1411
        %v1479 = vpop.f32.mrb[0].mxu0
        %v1480 = vadd.f32 0.0, %v1479
        %v1481 = vpop.f32.mrb[0].mxu0
        %1482 = vdwg.mxu0
        %v1483 = vld [vmem:[%s10 + $0x10] sm:$0xff]
        %v1485 = vsel %vm837, %v1480, 0
        %1487 = vmatprep.subr.mxu0 0.0
        %1488 = vmatpush1.msra.mxu0 %v1483
        %1489 = vmatprep.subr.mxu0 0.0
        %1490 = vmatpush1.msra.mxu0 0.0
        %1491 = vmatprep.subr.mxu0 0.0
        %1492 = vmatpush1.msra.mxu0 0.0
        %1493 = vmatprep.subr.mxu0 0.0
        %1494 = vmatpush1.msra.mxu0 0.0
        %1495 = vmatprep.subr.mxu0 0.0
        %1496 = vmatpush1.msra.mxu0 0.0
        %1497 = vmatprep.subr.mxu0 0.0
        %1498 = vmatpush1.msra.mxu0 0.0
        %1499 = vmatprep.subr.mxu0 0.0
        %1500 = vmatpush1.msra.mxu0 0.0
        %1501 = vmatprep.subr.mxu0 0.0
        %1502 = vmatpush1.msra.mxu0 0.0
        %1503 = vmatprep.subr.mxu0 0.0
        %1504 = vmatpush1.msra.mxu0 0.0
        %1505 = vmatprep.subr.mxu0 0.0
        %1506 = vmatpush1.msra.mxu0 0.0
        %1507 = vmatprep.subr.mxu0 0.0
        %1508 = vmatpush1.msra.mxu0 0.0
        %1509 = vmatprep.subr.mxu0 0.0
        %1510 = vmatpush1.msra.mxu0 0.0
        %1511 = vmatprep.subr.mxu0 0.0
        %1512 = vmatpush1.msra.mxu0 0.0
        %1513 = vmatprep.subr.mxu0 0.0
        %1514 = vmatpush1.msra.mxu0 0.0
        %1515 = vmatprep.subr.mxu0 0.0
        %1516 = vmatpush1.msra.mxu0 0.0
        %1517 = vmatprep.subr.mxu0 0.0
        %1518 = vmatpush1.msra.mxu0 0.0
        %1519 = vmatprep.subr.mxu0 0.0
        %1520 = vmatpush1.msra.mxu0 0.0
        %1521 = vmatprep.subr.mxu0 0.0
        %1522 = vmatpush1.msra.mxu0 0.0
        %1523 = vmatprep.subr.mxu0 0.0
        %1524 = vmatpush1.msra.mxu0 0.0
        %1525 = vmatprep.subr.mxu0 0.0
        %1526 = vmatpush1.msra.mxu0 0.0
        %1527 = vmatprep.subr.mxu0 0.0
        %1528 = vmatpush1.msra.mxu0 0.0
        %1529 = vmatprep.subr.mxu0 0.0
        %1530 = vmatpush1.msra.mxu0 0.0
        %1531 = vmatprep.subr.mxu0 0.0
        %1532 = vmatpush1.msra.mxu0 0.0
        %1533 = vmatprep.subr.mxu0 0.0
        %1534 = vmatpush1.msra.mxu0 0.0
        %1535 = vmatprep.subr.mxu0 0.0
        %1536 = vmatpush1.msra.mxu0 0.0
        %1537 = vmatprep.subr.mxu0 0.0
        %1538 = vmatpush1.msra.mxu0 0.0
        %1539 = vmatprep.subr.mxu0 0.0
        %1540 = vmatpush1.msra.mxu0 0.0
        %1541 = vmatprep.subr.mxu0 0.0
        %1542 = vmatpush1.msra.mxu0 0.0
        %1543 = vmatprep.subr.mxu0 0.0
        %1544 = vmatpush1.msra.mxu0 0.0
        %1545 = vmatprep.subr.mxu0 0.0
        %1546 = vmatpush1.msra.mxu0 0.0
        %1547 = vmatprep.subr.mxu0 0.0
        %1548 = vmatpush1.msra.mxu0 0.0
        %1549 = vmatprep.subr.mxu0 0.0
        %1550 = vmatpush1.msra.mxu0 0.0
        %1551 = vmatprep.mubr.f32.mxu0 0.0
        %1552 = vmatmul.mubr.f32.gmra.mrb[0].mxu0 %v1485
        %v1553 = vpop.f32.mrb[0].mxu0
        %v1554 = vadd.f32 0.0, %v1553
        %v1555 = vpop.f32.mrb[0].mxu0
        %1556 = vdwg.mxu0
        %v1557 = vadd.f32 %v1313, %v1554
        %1558 = vrot.lane.b32.xlu0 %v665, 104
        %v1559 = vpop.permute.xlu0 %1558
        %1560 = vrot.lane.b32.xlu0 %v749, 104
        %v1561 = vpop.permute.xlu0 %1560
        %v1562 = vsel %vm837, %v1559, 0
        %v1564 = vsel %vm837, %v1561, 0
        %1566 = vmatprep.subr.mxu0 0.0
        %1567 = vmatpush1.xpose.msra.mxu0 %v1564
        %1568 = vmatprep.subr.mxu0 0.0
        %1569 = vmatpush1.xpose.msra.mxu0 0.0
        %1570 = vmatprep.subr.mxu0 0.0
        %1571 = vmatpush1.xpose.msra.mxu0 0.0
        %1572 = vmatprep.subr.mxu0 0.0
        %1573 = vmatpush1.xpose.msra.mxu0 0.0
        %1574 = vmatprep.subr.mxu0 0.0
        %1575 = vmatpush1.xpose.msra.mxu0 0.0
        %1576 = vmatprep.subr.mxu0 0.0
        %1577 = vmatpush1.xpose.msra.mxu0 0.0
        %1578 = vmatprep.subr.mxu0 0.0
        %1579 = vmatpush1.xpose.msra.mxu0 0.0
        %1580 = vmatprep.subr.mxu0 0.0
        %1581 = vmatpush1.xpose.msra.mxu0 0.0
        %1582 = vmatprep.subr.mxu0 0.0
        %1583 = vmatpush1.xpose.msra.mxu0 0.0
        %1584 = vmatprep.subr.mxu0 0.0
        %1585 = vmatpush1.xpose.msra.mxu0 0.0
        %1586 = vmatprep.subr.mxu0 0.0
        %1587 = vmatpush1.xpose.msra.mxu0 0.0
        %1588 = vmatprep.subr.mxu0 0.0
        %1589 = vmatpush1.xpose.msra.mxu0 0.0
        %1590 = vmatprep.subr.mxu0 0.0
        %1591 = vmatpush1.xpose.msra.mxu0 0.0
        %1592 = vmatprep.subr.mxu0 0.0
        %1593 = vmatpush1.xpose.msra.mxu0 0.0
        %1594 = vmatprep.subr.mxu0 0.0
        %1595 = vmatpush1.xpose.msra.mxu0 0.0
        %1596 = vmatprep.subr.mxu0 0.0
        %1597 = vmatpush1.xpose.msra.mxu0 0.0
        %1598 = vmatprep.subr.mxu0 0.0
        %1599 = vmatpush1.xpose.msra.mxu0 0.0
        %1600 = vmatprep.subr.mxu0 0.0
        %1601 = vmatpush1.xpose.msra.mxu0 0.0
        %1602 = vmatprep.subr.mxu0 0.0
        %1603 = vmatpush1.xpose.msra.mxu0 0.0
        %1604 = vmatprep.subr.mxu0 0.0
        %1605 = vmatpush1.xpose.msra.mxu0 0.0
        %1606 = vmatprep.subr.mxu0 0.0
        %1607 = vmatpush1.xpose.msra.mxu0 0.0
        %1608 = vmatprep.subr.mxu0 0.0
        %1609 = vmatpush1.xpose.msra.mxu0 0.0
        %1610 = vmatprep.subr.mxu0 0.0
        %1611 = vmatpush1.xpose.msra.mxu0 0.0
        %1612 = vmatprep.subr.mxu0 0.0
        %1613 = vmatpush1.xpose.msra.mxu0 0.0
        %1614 = vmatprep.subr.mxu0 0.0
        %1615 = vmatpush1.xpose.msra.mxu0 0.0
        %1616 = vmatprep.subr.mxu0 0.0
        %1617 = vmatpush1.xpose.msra.mxu0 0.0
        %1618 = vmatprep.subr.mxu0 0.0
        %1619 = vmatpush1.xpose.msra.mxu0 0.0
        %1620 = vmatprep.subr.mxu0 0.0
        %1621 = vmatpush1.xpose.msra.mxu0 0.0
        %1622 = vmatprep.subr.mxu0 0.0
        %1623 = vmatpush1.xpose.msra.mxu0 0.0
        %1624 = vmatprep.subr.mxu0 0.0
        %1625 = vmatpush1.xpose.msra.mxu0 0.0
        %1626 = vmatprep.subr.mxu0 0.0
        %1627 = vmatpush1.xpose.msra.mxu0 0.0
        %1628 = vmatprep.subr.mxu0 0.0
        %1629 = vmatpush1.xpose.msra.mxu0 0.0
        %1630 = vmatprep.mubr.f32.mxu0 0.0
        %1631 = vmatmul.mubr.f32.gmra.mrb[0].mxu0 %v1562
        %v1632 = vpop.f32.mrb[0].mxu0
        %v1633 = vadd.f32 0.0, %v1632
        %v1634 = vpop.f32.mrb[0].mxu0
        %1635 = vdwg.mxu0
        %v1636 = vmul.f32 %v1633, 0.35355338
        %v1637 = vadd.f32 %v1636, %v836
        %v1638 = vsel %vm837, %v1637, -inf
        %1639 = vmax.xlane.f32.xlu0 %v1638
        %v1640 = vpop.xlane.xlu0 %1639
        %v1641 = vsub.f32 %v1637, %v1640
        %v1642 = vmul.f32 %v1641, 1.442695
        %v1643 = vpow.pop %v1642
        %v1644 = vsel %vm837, %v1643, 0.0
        %1645 = vadd.xlane.f32.xlu0 %v1644
        %v1646 = vpop.xlane.xlu0 %1645
        %v1647 = vrcp.pop %v1646
        %v1648 = vmul.f32 %v1643, %v1647
        %1649 = vrot.lane.b32.xlu0 %v833, 104
        %v1650 = vpop.permute.xlu0 %1649
        %v1653 = vsel %vm837, %v1648, 0
        %1655 = vmatprep.subr.mxu0 0.0
        %1656 = vmatpush1.msra.mxu0 %v1650
        %1657 = vmatprep.subr.mxu0 0.0
        %1658 = vmatpush1.msra.mxu0 0.0
        %1659 = vmatprep.subr.mxu0 0.0
        %1660 = vmatpush1.msra.mxu0 0.0
        %1661 = vmatprep.subr.mxu0 0.0
        %1662 = vmatpush1.msra.mxu0 0.0
        %1663 = vmatprep.subr.mxu0 0.0
        %1664 = vmatpush1.msra.mxu0 0.0
        %1665 = vmatprep.subr.mxu0 0.0
        %1666 = vmatpush1.msra.mxu0 0.0
        %1667 = vmatprep.subr.mxu0 0.0
        %1668 = vmatpush1.msra.mxu0 0.0
        %1669 = vmatprep.subr.mxu0 0.0
        %1670 = vmatpush1.msra.mxu0 0.0
        %1671 = vmatprep.subr.mxu0 0.0
        %1672 = vmatpush1.msra.mxu0 0.0
        %1673 = vmatprep.subr.mxu0 0.0
        %1674 = vmatpush1.msra.mxu0 0.0
        %1675 = vmatprep.subr.mxu0 0.0
        %1676 = vmatpush1.msra.mxu0 0.0
        %1677 = vmatprep.subr.mxu0 0.0
        %1678 = vmatpush1.msra.mxu0 0.0
        %1679 = vmatprep.subr.mxu0 0.0
        %1680 = vmatpush1.msra.mxu0 0.0
        %1681 = vmatprep.subr.mxu0 0.0
        %1682 = vmatpush1.msra.mxu0 0.0
        %1683 = vmatprep.subr.mxu0 0.0
        %1684 = vmatpush1.msra.mxu0 0.0
        %1685 = vmatprep.subr.mxu0 0.0
        %1686 = vmatpush1.msra.mxu0 0.0
        %1687 = vmatprep.subr.mxu0 0.0
        %1688 = vmatpush1.msra.mxu0 0.0
        %1689 = vmatprep.subr.mxu0 0.0
        %1690 = vmatpush1.msra.mxu0 0.0
        %1691 = vmatprep.subr.mxu0 0.0
        %1692 = vmatpush1.msra.mxu0 0.0
        %1693 = vmatprep.subr.mxu0 0.0
        %1694 = vmatpush1.msra.mxu0 0.0
        %1695 = vmatprep.subr.mxu0 0.0
        %1696 = vmatpush1.msra.mxu0 0.0
        %1697 = vmatprep.subr.mxu0 0.0
        %1698 = vmatpush1.msra.mxu0 0.0
        %1699 = vmatprep.subr.mxu0 0.0
        %1700 = vmatpush1.msra.mxu0 0.0
        %1701 = vmatprep.subr.mxu0 0.0
        %1702 = vmatpush1.msra.mxu0 0.0
        %1703 = vmatprep.subr.mxu0 0.0
        %1704 = vmatpush1.msra.mxu0 0.0
        %1705 = vmatprep.subr.mxu0 0.0
        %1706 = vmatpush1.msra.mxu0 0.0
        %1707 = vmatprep.subr.mxu0 0.0
        %1708 = vmatpush1.msra.mxu0 0.0
        %1709 = vmatprep.subr.mxu0 0.0
        %1710 = vmatpush1.msra.mxu0 0.0
        %1711 = vmatprep.subr.mxu0 0.0
        %1712 = vmatpush1.msra.mxu0 0.0
        %1713 = vmatprep.subr.mxu0 0.0
        %1714 = vmatpush1.msra.mxu0 0.0
        %1715 = vmatprep.subr.mxu0 0.0
        %1716 = vmatpush1.msra.mxu0 0.0
        %1717 = vmatprep.subr.mxu0 0.0
        %1718 = vmatpush1.msra.mxu0 0.0
        %1719 = vmatprep.mubr.f32.mxu0 0.0
        %1720 = vmatmul.mubr.f32.gmra.mrb[0].mxu0 %v1653
        %v1721 = vpop.f32.mrb[0].mxu0
        %v1722 = vadd.f32 0.0, %v1721
        %v1723 = vpop.f32.mrb[0].mxu0
        %1724 = vdwg.mxu0
        %v1725 = vld [vmem:[%s10 + $0x18] sm:$0xff]
        %v1727 = vsel %vm837, %v1722, 0
        %1729 = vmatprep.subr.mxu0 0.0
        %1730 = vmatpush1.msra.mxu0 %v1725
        %1731 = vmatprep.subr.mxu0 0.0
        %1732 = vmatpush1.msra.mxu0 0.0
        %1733 = vmatprep.subr.mxu0 0.0
        %1734 = vmatpush1.msra.mxu0 0.0
        %1735 = vmatprep.subr.mxu0 0.0
        %1736 = vmatpush1.msra.mxu0 0.0
        %1737 = vmatprep.subr.mxu0 0.0
        %1738 = vmatpush1.msra.mxu0 0.0
        %1739 = vmatprep.subr.mxu0 0.0
        %1740 = vmatpush1.msra.mxu0 0.0
        %1741 = vmatprep.subr.mxu0 0.0
        %1742 = vmatpush1.msra.mxu0 0.0
        %1743 = vmatprep.subr.mxu0 0.0
        %1744 = vmatpush1.msra.mxu0 0.0
        %1745 = vmatprep.subr.mxu0 0.0
        %1746 = vmatpush1.msra.mxu0 0.0
        %1747 = vmatprep.subr.mxu0 0.0
        %1748 = vmatpush1.msra.mxu0 0.0
        %1749 = vmatprep.subr.mxu0 0.0
        %1750 = vmatpush1.msra.mxu0 0.0
        %1751 = vmatprep.subr.mxu0 0.0
        %1752 = vmatpush1.msra.mxu0 0.0
        %1753 = vmatprep.subr.mxu0 0.0
        %1754 = vmatpush1.msra.mxu0 0.0
        %1755 = vmatprep.subr.mxu0 0.0
        %1756 = vmatpush1.msra.mxu0 0.0
        %1757 = vmatprep.subr.mxu0 0.0
        %1758 = vmatpush1.msra.mxu0 0.0
        %1759 = vmatprep.subr.mxu0 0.0
        %1760 = vmatpush1.msra.mxu0 0.0
        %1761 = vmatprep.subr.mxu0 0.0
        %1762 = vmatpush1.msra.mxu0 0.0
        %1763 = vmatprep.subr.mxu0 0.0
        %1764 = vmatpush1.msra.mxu0 0.0
        %1765 = vmatprep.subr.mxu0 0.0
        %1766 = vmatpush1.msra.mxu0 0.0
        %1767 = vmatprep.subr.mxu0 0.0
        %1768 = vmatpush1.msra.mxu0 0.0
        %1769 = vmatprep.subr.mxu0 0.0
        %1770 = vmatpush1.msra.mxu0 0.0
        %1771 = vmatprep.subr.mxu0 0.0
        %1772 = vmatpush1.msra.mxu0 0.0
        %1773 = vmatprep.subr.mxu0 0.0
        %1774 = vmatpush1.msra.mxu0 0.0
        %1775 = vmatprep.subr.mxu0 0.0
        %1776 = vmatpush1.msra.mxu0 0.0
        %1777 = vmatprep.subr.mxu0 0.0
        %1778 = vmatpush1.msra.mxu0 0.0
        %1779 = vmatprep.subr.mxu0 0.0
        %1780 = vmatpush1.msra.mxu0 0.0
        %1781 = vmatprep.subr.mxu0 0.0
        %1782 = vmatpush1.msra.mxu0 0.0
        %1783 = vmatprep.subr.mxu0 0.0
        %1784 = vmatpush1.msra.mxu0 0.0
        %1785 = vmatprep.subr.mxu0 0.0
        %1786 = vmatpush1.msra.mxu0 0.0
        %1787 = vmatprep.subr.mxu0 0.0
        %1788 = vmatpush1.msra.mxu0 0.0
        %1789 = vmatprep.subr.mxu0 0.0
        %1790 = vmatpush1.msra.mxu0 0.0
        %1791 = vmatprep.subr.mxu0 0.0
        %1792 = vmatpush1.msra.mxu0 0.0
        %1793 = vmatprep.mubr.f32.mxu0 0.0
        %1794 = vmatmul.mubr.f32.gmra.mrb[0].mxu0 %v1727
        %v1795 = vpop.f32.mrb[0].mxu0
        %v1796 = vadd.f32 0.0, %v1795
        %v1797 = vpop.f32.mrb[0].mxu0
        %1798 = vdwg.mxu0
        %v1799 = vadd.f32 %v1557, %v1796
        %v1800 = vld [vmem:[%s11] sm:$0x1]
        %v1802 = vlaneseq
        %v1803 = vshrl.u32 %v1802, 7
        %v1804 = vsub.s32 0, %v1803
        %v1805 = vrot.slane %v1800, %v1804
        %v1807 = vadd.f32 %v1799, %v1805
        %1808 = vrot.lane.b32.xlu0 %v749, 32
        %v1809 = vpop.permute.xlu0 %1808
        %1811 = vrot.lane.b32.xlu0 %v833, 64
        %v1812 = vpop.permute.xlu0 %1811
        %v1814 = vsel %vm594, %v1807, %v1809
        %vm1815 = vcmask 523264
        %v1816 = vsel %vm1815, %v1814, %v1812
        %vm1817 = vcmask 785408
        %1818 = vst.msk [vmem:[%s579] sm:$0xff] %vm1817, %v1816
        %s1819 = sand.u32 %s316, 1
        %s1820 = scalar_lea.sflag [#allocation4], %s1819
        %s1821 = sand.u32 %s316, 1
        %s1822 = smul.addr %s1821, 8
        %s1823 = scalar_lea.vmem [#allocation14], %s1822
        // Predicated region
        $region97: #{tpu_custom_call.1} parent=67 // pred_check
          %p1824 = pneg %p326
        $region98: #{tpu_custom_call.1} parent=67 // pred_check_branch
          %1826 = sbr.rel (%p1824) target = $region100
        $region99: #{tpu_custom_call.1} parent=67 // pred_region
          %s1828 = ssub.s32 128, 128
          %1829 = vsyncadd %s1820, %s1828
          %s1830 = smul.addr %s36, 128
          %s1831 = scalar_lea.hbm %s12, %s1830
          %s1833 = sshll.u32 %s1823, 4
          %s1834 = int_to_ptr.vmem [resolvable:$true] %s1833
          %1836 = dma.vmem_to_hbm [thread:$0]  %s1834, 128, %s1831, %s1820
        $region100: #{tpu_custom_call.1} parent=67 // pred_fallthru
          _
      $region68: #{tpu_custom_call.1} parent=5 // pred_fallthru
        _
      %p1837 = scmp.le.s32.totalorder 2, %s31
      // Predicated region
      $region101: #{tpu_custom_call.1} parent=5 // pred_check
        %p1838 = pneg %p1837
      $region102: #{tpu_custom_call.1} parent=5 // pred_check_branch
        %1840 = sbr.rel (%p1838) target = $region104
      $region103: #{tpu_custom_call.1} parent=5 // pred_region
        %s1841 = ssub.s32 %s31, 2
        // Predicated region
        $region105: #{tpu_custom_call.1} parent=103 // pred_check
          %p1842 = pneg %p332
        $region106: #{tpu_custom_call.1} parent=103 // pred_check_branch
          %1844 = sbr.rel (%p1842) target = $region108
        $region107: #{tpu_custom_call.1} parent=103 // pred_region
          %s1845 = sand.u32 %s317, 1
          %s1846 = scalar_lea.sflag [#allocation4], %s1845
          %s1847 = sand.u32 %s317, 1
          %s1848 = smul.addr %s1847, 8
          %s1849 = scalar_lea.vmem [#allocation14], %s1848
          %1850 = dma.done %s1846, 128
        $region108: #{tpu_custom_call.1} parent=103 // pred_fallthru
          _
      $region104: #{tpu_custom_call.1} parent=5 // pred_fallthru
        _
    $region6: #{tpu_custom_call.1} parent=1 // loop_footer
      %s35 = sadd.s32 1, %s31
    $region7: #{tpu_custom_call.1} parent=1 // loop_footer_branch
      %30 = sbr.rel target = $region3
    $region8: #{tpu_custom_call.1} parent=1 // loop_exit
      _
    %1851 = vsyncpa [#allocation3], 1
    %s1852 = scalar_lea.sflag [#allocation3], 1
    %1853 = vsyncpa %s1852, 1
    %1854 = vsyncpa [#allocation6], 1
    %s1855 = scalar_lea.sflag [#allocation6], 1
    %1856 = vsyncpa %s1855, 1
    %1857 = vsyncpa [#allocation9], 1
    %s1858 = scalar_lea.sflag [#allocation9], 1
    %1859 = vsyncpa %s1858, 1
    %1860 = vsyncpa [#allocation12], 1
    %1861 = vsyncpa [#allocation4], 1
    %s1862 = scalar_lea.sflag [#allocation4], 1
    %1863 = vsyncpa %s1862, 1

</llo_original>
